<compile_context>
chip_gen: v6e
topology: v6e:2x2x1
jax: 0.10.0
libtpu: 0.0.40
codegen_flags: <defaults>
</compile_context>

<pallas_src>
import functools
import math

import jax
import jax.numpy as jnp
from jax.experimental import pallas as pl
from jax.experimental.pallas import tpu as pltpu


def _clip_embedding_kernel(tok_ref, emb_hbm, pos_ref, out_ref,
                           scratch, sems, *, tile_t, seqs_per_chunk):
    # tok_ref  : SMEM (N_pad,) int32   -- scalar-prefetched token ids.
    # emb_hbm  : HBM  (V, D)           -- raw ref, gathered row-by-row via DMA.
    # pos_ref  : VMEM (S, D)           -- resident across the whole grid.
    # out_ref  : VMEM (tile_t, D)
    # scratch  : VMEM (tile_t, D)      -- gather landing buffer.
    # sems     : DMA semaphores (tile_t,)
    base = pl.program_id(0) * tile_t

    # Issue all TILE_T row-gather DMAs so many small copies are in flight...
    for t in range(tile_t):
        row = tok_ref[base + t]
        pltpu.make_async_copy(
            emb_hbm.at[pl.ds(row, 1), :],
            scratch.at[pl.ds(t, 1), :],
            sems.at[t],
        ).start()
    # ...then wait for them all.
    for t in range(tile_t):
        pltpu.make_async_copy(
            emb_hbm.at[pl.ds(0, 1), :],
            scratch.at[pl.ds(t, 1), :],
            sems.at[t],
        ).wait()

    S, D = pos_ref.shape
    # Each chunk covers `seqs_per_chunk` whole sequences (tile_t = m * S), so
    # the position add is a plain broadcast over the sequence axis.
    gathered = scratch[...].reshape(seqs_per_chunk, S, D)
    y = gathered + pos_ref[...][None, :, :]
    out_ref[...] = y.reshape(tile_t, D).astype(out_ref.dtype)


def clip_embedding(tokens, token_embedding, position_embedding, *, tile_t=None):
    B, S = tokens.shape
    V, D = token_embedding.shape
    assert position_embedding.shape == (S, D)

    # ---- chunk sizing --------------------------------------------------------
    # tile_t = m * S rows per grid step; must be a multiple of 8 so output
    # blocks are sublane-dense.  Default heuristic grows toward ~128 rows.
    if tile_t is None:
        m = 8 // math.gcd(S, 8)
        while m * 2 * S <= 128 and m * 2 <= max(B, 1) * 2:
            m *= 2
    else:
        assert tile_t % S == 0 and tile_t % 8 == 0, "tile_t must be a multiple of S and 8"
        m = tile_t // S
    tile_t = m * S

    # Pad the batch so chunks tile the flattened token axis exactly.
    b_pad = ((B + m - 1) // m) * m
    n_pad = b_pad * S

    tok = tokens.astype(jnp.int32)
    if b_pad != B:
        tok = jnp.concatenate([tok, jnp.zeros((b_pad - B, S), jnp.int32)], axis=0)
    # nn.Embedding raises on out-of-range ids; the raw HBM row DMA is unchecked
    # on TPU, so clamp defensively (documented divergence from PyTorch).
    tok_flat = jnp.clip(tok.reshape(n_pad), 0, V - 1)

    num_chunks = n_pad // tile_t
    dtype = token_embedding.dtype

    kernel = functools.partial(
        _clip_embedding_kernel, tile_t=tile_t, seqs_per_chunk=m)

    grid_spec = pltpu.PrefetchScalarGridSpec(
        num_scalar_prefetch=1,
        grid=(num_chunks,),
        in_specs=[
            # Embedding table: stays in HBM, gathered manually in-kernel.
            pl.BlockSpec(memory_space=pl.ANY),
            # Position table: full-array block, constant index -> VMEM-resident.
            pl.BlockSpec((S, D), lambda i, tok: (0, 0)),
        ],
        out_specs=pl.BlockSpec((tile_t, D), lambda i, tok: (i, 0)),
        scratch_shapes=[
            pltpu.VMEM((tile_t, D), dtype),
            pltpu.SemaphoreType.DMA((tile_t,)),
        ],
    )

    out = pl.pallas_call(
        kernel,
        out_shape=jax.ShapeDtypeStruct((n_pad, D), dtype),
        grid_spec=grid_spec,
        compiler_params=pltpu.CompilerParams(
            dimension_semantics=("parallel",),
        ),
        cost_estimate=pl.CostEstimate(
            flops=n_pad * D,
            transcendentals=0,
            bytes_accessed=(2 * n_pad * D + S * D) * dtype.itemsize,
        ),
    )(tok_flat, token_embedding, position_embedding)

    return out[: B * S].reshape(B, S, D)


if __name__ == "__main__":
    # Small shapes consistent with the module's forward.  D=128 keeps blocks
    # lane-dense (real CLIP n_embd=768 is already 6x128).
    vocab, n_token, n_embd = 512, 8, 128
    batch = 8

    key = jax.random.PRNGKey(0)
    k_tok, k_emb, k_pos = jax.random.split(key, 3)

    token_embedding = jax.random.normal(k_emb, (vocab, n_embd), dtype=jnp.float32)
    # Learned position embedding (zeros at init); use small nonzero values so
    # the broadcast-add path is actually exercised by the check.
    position_embedding = 0.01 * jax.random.normal(
        k_pos, (n_token, n_embd), dtype=jnp.float32)

    tokens = jax.random.randint(k_tok, (batch, n_token), 0, vocab, dtype=jnp.int32)

    # tile_t=32 -> 4 sequences per chunk, 2 grid chunks (exercises the
    # pipeline and gives both v7x TensorCores a chunk each).
    out = clip_embedding(tokens, token_embedding, position_embedding, tile_t=32)
    out = jax.block_until_ready(out)

    # Pure-JAX reference check.
    ref = jnp.take(token_embedding, tokens, axis=0) + position_embedding[None, :, :]
    assert out.shape == (batch, n_token, n_embd)
    assert jnp.allclose(out, ref, atol=1e-5, rtol=1e-5)

    print("KERNEL_OK")
</pallas_src>

<mosaic_0001>
module attributes {stable_mosaic.version = 11 : i64} {
  func.func @_clip_embedding_kernel(%arg0: i32, %arg1: memref<64xi32, #tpu.memory_space<smem>>, %arg2: memref<512x128xf32, #tpu.memory_space<any>>, %arg3: memref<8x128xf32, #tpu.memory_space<vmem>>, %arg4: memref<32x128xf32, #tpu.memory_space<vmem>>, %arg5: memref<32x128xf32, #tpu.memory_space<vmem>>, %arg6: memref<32x!tpu.dma_semaphore, #tpu.memory_space<semaphore_mem>>) attributes {dimension_semantics = [#tpu.dimension_semantics<parallel>], iteration_bounds = array<i64: 2>, scalar_prefetch = 1 : i64, scratch_operands = 2 : i64, tpu.core_type = #tpu.core_type<tc>, window_params = [{}, {pipeline_mode = #tpu.pipeline_mode<synchronous>, transform_indices = @transform_1, window_bounds = array<i64: 8, 128>}, {transform_indices = @transform_2, window_bounds = array<i64: 32, 128>}]} {
    %c32_i32 = arith.constant 32 : i32
    %0 = arith.muli %arg0, %c32_i32 : i32
    %c0_i32 = arith.constant 0 : i32
    %1 = arith.addi %0, %c0_i32 : i32
    %2 = arith.index_cast %1 : i32 to index
    %3 = memref.load %arg1[%2] : memref<64xi32, #tpu.memory_space<smem>>
    %c0_i32_0 = arith.constant 0 : i32
    %c0_i32_1 = arith.constant 0 : i32
    %4 = tpu.memref_slice %arg2[%3, %c0_i32_1] : memref<512x128xf32, #tpu.memory_space<any>> -> memref<1x128xf32, #tpu.memory_space<any>>
    %c0_i32_2 = arith.constant 0 : i32
    %c0_i32_3 = arith.constant 0 : i32
    %5 = tpu.memref_slice %arg5[%c0_i32_2, %c0_i32_3] : memref<32x128xf32, #tpu.memory_space<vmem>> -> memref<1x128xf32, #tpu.memory_space<vmem>>
    %6 = tpu.memref_slice %arg6[%c0_i32_0] : memref<32x!tpu.dma_semaphore, #tpu.memory_space<semaphore_mem>> -> memref<1x!tpu.dma_semaphore, #tpu.memory_space<semaphore_mem>>
    %7 = tpu.memref_squeeze %6 : memref<1x!tpu.dma_semaphore, #tpu.memory_space<semaphore_mem>> -> memref<!tpu.dma_semaphore, #tpu.memory_space<semaphore_mem>>
    tpu.enqueue_dma source(%4 : memref<1x128xf32, #tpu.memory_space<any>>) target(%5 : memref<1x128xf32, #tpu.memory_space<vmem>>) target_semaphore(%7 : memref<!tpu.dma_semaphore, #tpu.memory_space<semaphore_mem>>)
    %c1_i32 = arith.constant 1 : i32
    %8 = arith.addi %0, %c1_i32 : i32
    %9 = arith.index_cast %8 : i32 to index
    %10 = memref.load %arg1[%9] : memref<64xi32, #tpu.memory_space<smem>>
    %c1_i32_4 = arith.constant 1 : i32
    %c0_i32_5 = arith.constant 0 : i32
    %11 = tpu.memref_slice %arg2[%10, %c0_i32_5] : memref<512x128xf32, #tpu.memory_space<any>> -> memref<1x128xf32, #tpu.memory_space<any>>
    %c1_i32_6 = arith.constant 1 : i32
    %c0_i32_7 = arith.constant 0 : i32
    %12 = tpu.memref_slice %arg5[%c1_i32_6, %c0_i32_7] : memref<32x128xf32, #tpu.memory_space<vmem>> -> memref<1x128xf32, #tpu.memory_space<vmem>>
    %13 = tpu.memref_slice %arg6[%c1_i32_4] : memref<32x!tpu.dma_semaphore, #tpu.memory_space<semaphore_mem>> -> memref<1x!tpu.dma_semaphore, #tpu.memory_space<semaphore_mem>>
    %14 = tpu.memref_squeeze %13 : memref<1x!tpu.dma_semaphore, #tpu.memory_space<semaphore_mem>> -> memref<!tpu.dma_semaphore, #tpu.memory_space<semaphore_mem>>
    tpu.enqueue_dma source(%11 : memref<1x128xf32, #tpu.memory_space<any>>) target(%12 : memref<1x128xf32, #tpu.memory_space<vmem>>) target_semaphore(%14 : memref<!tpu.dma_semaphore, #tpu.memory_space<semaphore_mem>>)
    %c2_i32 = arith.constant 2 : i32
    %15 = arith.addi %0, %c2_i32 : i32
    %16 = arith.index_cast %15 : i32 to index
    %17 = memref.load %arg1[%16] : memref<64xi32, #tpu.memory_space<smem>>
    %c2_i32_8 = arith.constant 2 : i32
    %c0_i32_9 = arith.constant 0 : i32
    %18 = tpu.memref_slice %arg2[%17, %c0_i32_9] : memref<512x128xf32, #tpu.memory_space<any>> -> memref<1x128xf32, #tpu.memory_space<any>>
    %c2_i32_10 = arith.constant 2 : i32
    %c0_i32_11 = arith.constant 0 : i32
    %19 = tpu.memref_slice %arg5[%c2_i32_10, %c0_i32_11] : memref<32x128xf32, #tpu.memory_space<vmem>> -> memref<1x128xf32, #tpu.memory_space<vmem>>
    %20 = tpu.memref_slice %arg6[%c2_i32_8] : memref<32x!tpu.dma_semaphore, #tpu.memory_space<semaphore_mem>> -> memref<1x!tpu.dma_semaphore, #tpu.memory_space<semaphore_mem>>
    %21 = tpu.memref_squeeze %20 : memref<1x!tpu.dma_semaphore, #tpu.memory_space<semaphore_mem>> -> memref<!tpu.dma_semaphore, #tpu.memory_space<semaphore_mem>>
    tpu.enqueue_dma source(%18 : memref<1x128xf32, #tpu.memory_space<any>>) target(%19 : memref<1x128xf32, #tpu.memory_space<vmem>>) target_semaphore(%21 : memref<!tpu.dma_semaphore, #tpu.memory_space<semaphore_mem>>)
    %c3_i32 = arith.constant 3 : i32
    %22 = arith.addi %0, %c3_i32 : i32
    %23 = arith.index_cast %22 : i32 to index
    %24 = memref.load %arg1[%23] : memref<64xi32, #tpu.memory_space<smem>>
    %c3_i32_12 = arith.constant 3 : i32
    %c0_i32_13 = arith.constant 0 : i32
    %25 = tpu.memref_slice %arg2[%24, %c0_i32_13] : memref<512x128xf32, #tpu.memory_space<any>> -> memref<1x128xf32, #tpu.memory_space<any>>
    %c3_i32_14 = arith.constant 3 : i32
    %c0_i32_15 = arith.constant 0 : i32
    %26 = tpu.memref_slice %arg5[%c3_i32_14, %c0_i32_15] : memref<32x128xf32, #tpu.memory_space<vmem>> -> memref<1x128xf32, #tpu.memory_space<vmem>>
    %27 = tpu.memref_slice %arg6[%c3_i32_12] : memref<32x!tpu.dma_semaphore, #tpu.memory_space<semaphore_mem>> -> memref<1x!tpu.dma_semaphore, #tpu.memory_space<semaphore_mem>>
    %28 = tpu.memref_squeeze %27 : memref<1x!tpu.dma_semaphore, #tpu.memory_space<semaphore_mem>> -> memref<!tpu.dma_semaphore, #tpu.memory_space<semaphore_mem>>
    tpu.enqueue_dma source(%25 : memref<1x128xf32, #tpu.memory_space<any>>) target(%26 : memref<1x128xf32, #tpu.memory_space<vmem>>) target_semaphore(%28 : memref<!tpu.dma_semaphore, #tpu.memory_space<semaphore_mem>>)
    %c4_i32 = arith.constant 4 : i32
    %29 = arith.addi %0, %c4_i32 : i32
    %30 = arith.index_cast %29 : i32 to index
    %31 = memref.load %arg1[%30] : memref<64xi32, #tpu.memory_space<smem>>
    %c4_i32_16 = arith.constant 4 : i32
    %c0_i32_17 = arith.constant 0 : i32
    %32 = tpu.memref_slice %arg2[%31, %c0_i32_17] : memref<512x128xf32, #tpu.memory_space<any>> -> memref<1x128xf32, #tpu.memory_space<any>>
    %c4_i32_18 = arith.constant 4 : i32
    %c0_i32_19 = arith.constant 0 : i32
    %33 = tpu.memref_slice %arg5[%c4_i32_18, %c0_i32_19] : memref<32x128xf32, #tpu.memory_space<vmem>> -> memref<1x128xf32, #tpu.memory_space<vmem>>
    %34 = tpu.memref_slice %arg6[%c4_i32_16] : memref<32x!tpu.dma_semaphore, #tpu.memory_space<semaphore_mem>> -> memref<1x!tpu.dma_semaphore, #tpu.memory_space<semaphore_mem>>
    %35 = tpu.memref_squeeze %34 : memref<1x!tpu.dma_semaphore, #tpu.memory_space<semaphore_mem>> -> memref<!tpu.dma_semaphore, #tpu.memory_space<semaphore_mem>>
    tpu.enqueue_dma source(%32 : memref<1x128xf32, #tpu.memory_space<any>>) target(%33 : memref<1x128xf32, #tpu.memory_space<vmem>>) target_semaphore(%35 : memref<!tpu.dma_semaphore, #tpu.memory_space<semaphore_mem>>)
    %c5_i32 = arith.constant 5 : i32
    %36 = arith.addi %0, %c5_i32 : i32
    %37 = arith.index_cast %36 : i32 to index
    %38 = memref.load %arg1[%37] : memref<64xi32, #tpu.memory_space<smem>>
    %c5_i32_20 = arith.constant 5 : i32
    %c0_i32_21 = arith.constant 0 : i32
    %39 = tpu.memref_slice %arg2[%38, %c0_i32_21] : memref<512x128xf32, #tpu.memory_space<any>> -> memref<1x128xf32, #tpu.memory_space<any>>
    %c5_i32_22 = arith.constant 5 : i32
    %c0_i32_23 = arith.constant 0 : i32
    %40 = tpu.memref_slice %arg5[%c5_i32_22, %c0_i32_23] : memref<32x128xf32, #tpu.memory_space<vmem>> -> memref<1x128xf32, #tpu.memory_space<vmem>>
    %41 = tpu.memref_slice %arg6[%c5_i32_20] : memref<32x!tpu.dma_semaphore, #tpu.memory_space<semaphore_mem>> -> memref<1x!tpu.dma_semaphore, #tpu.memory_space<semaphore_mem>>
    %42 = tpu.memref_squeeze %41 : memref<1x!tpu.dma_semaphore, #tpu.memory_space<semaphore_mem>> -> memref<!tpu.dma_semaphore, #tpu.memory_space<semaphore_mem>>
    tpu.enqueue_dma source(%39 : memref<1x128xf32, #tpu.memory_space<any>>) target(%40 : memref<1x128xf32, #tpu.memory_space<vmem>>) target_semaphore(%42 : memref<!tpu.dma_semaphore, #tpu.memory_space<semaphore_mem>>)
    %c6_i32 = arith.constant 6 : i32
    %43 = arith.addi %0, %c6_i32 : i32
    %44 = arith.index_cast %43 : i32 to index
    %45 = memref.load %arg1[%44] : memref<64xi32, #tpu.memory_space<smem>>
    %c6_i32_24 = arith.constant 6 : i32
    %c0_i32_25 = arith.constant 0 : i32
    %46 = tpu.memref_slice %arg2[%45, %c0_i32_25] : memref<512x128xf32, #tpu.memory_space<any>> -> memref<1x128xf32, #tpu.memory_space<any>>
    %c6_i32_26 = arith.constant 6 : i32
    %c0_i32_27 = arith.constant 0 : i32
    %47 = tpu.memref_slice %arg5[%c6_i32_26, %c0_i32_27] : memref<32x128xf32, #tpu.memory_space<vmem>> -> memref<1x128xf32, #tpu.memory_space<vmem>>
    %48 = tpu.memref_slice %arg6[%c6_i32_24] : memref<32x!tpu.dma_semaphore, #tpu.memory_space<semaphore_mem>> -> memref<1x!tpu.dma_semaphore, #tpu.memory_space<semaphore_mem>>
    %49 = tpu.memref_squeeze %48 : memref<1x!tpu.dma_semaphore, #tpu.memory_space<semaphore_mem>> -> memref<!tpu.dma_semaphore, #tpu.memory_space<semaphore_mem>>
    tpu.enqueue_dma source(%46 : memref<1x128xf32, #tpu.memory_space<any>>) target(%47 : memref<1x128xf32, #tpu.memory_space<vmem>>) target_semaphore(%49 : memref<!tpu.dma_semaphore, #tpu.memory_space<semaphore_mem>>)
    %c7_i32 = arith.constant 7 : i32
    %50 = arith.addi %0, %c7_i32 : i32
    %51 = arith.index_cast %50 : i32 to index
    %52 = memref.load %arg1[%51] : memref<64xi32, #tpu.memory_space<smem>>
    %c7_i32_28 = arith.constant 7 : i32
    %c0_i32_29 = arith.constant 0 : i32
    %53 = tpu.memref_slice %arg2[%52, %c0_i32_29] : memref<512x128xf32, #tpu.memory_space<any>> -> memref<1x128xf32, #tpu.memory_space<any>>
    %c7_i32_30 = arith.constant 7 : i32
    %c0_i32_31 = arith.constant 0 : i32
    %54 = tpu.memref_slice %arg5[%c7_i32_30, %c0_i32_31] : memref<32x128xf32, #tpu.memory_space<vmem>> -> memref<1x128xf32, #tpu.memory_space<vmem>>
    %55 = tpu.memref_slice %arg6[%c7_i32_28] : memref<32x!tpu.dma_semaphore, #tpu.memory_space<semaphore_mem>> -> memref<1x!tpu.dma_semaphore, #tpu.memory_space<semaphore_mem>>
    %56 = tpu.memref_squeeze %55 : memref<1x!tpu.dma_semaphore, #tpu.memory_space<semaphore_mem>> -> memref<!tpu.dma_semaphore, #tpu.memory_space<semaphore_mem>>
    tpu.enqueue_dma source(%53 : memref<1x128xf32, #tpu.memory_space<any>>) target(%54 : memref<1x128xf32, #tpu.memory_space<vmem>>) target_semaphore(%56 : memref<!tpu.dma_semaphore, #tpu.memory_space<semaphore_mem>>)
    %c8_i32 = arith.constant 8 : i32
    %57 = arith.addi %0, %c8_i32 : i32
    %58 = arith.index_cast %57 : i32 to index
    %59 = memref.load %arg1[%58] : memref<64xi32, #tpu.memory_space<smem>>
    %c8_i32_32 = arith.constant 8 : i32
    %c0_i32_33 = arith.constant 0 : i32
    %60 = tpu.memref_slice %arg2[%59, %c0_i32_33] : memref<512x128xf32, #tpu.memory_space<any>> -> memref<1x128xf32, #tpu.memory_space<any>>
    %c8_i32_34 = arith.constant 8 : i32
    %c0_i32_35 = arith.constant 0 : i32
    %61 = tpu.memref_slice %arg5[%c8_i32_34, %c0_i32_35] : memref<32x128xf32, #tpu.memory_space<vmem>> -> memref<1x128xf32, #tpu.memory_space<vmem>>
    %62 = tpu.memref_slice %arg6[%c8_i32_32] : memref<32x!tpu.dma_semaphore, #tpu.memory_space<semaphore_mem>> -> memref<1x!tpu.dma_semaphore, #tpu.memory_space<semaphore_mem>>
    %63 = tpu.memref_squeeze %62 : memref<1x!tpu.dma_semaphore, #tpu.memory_space<semaphore_mem>> -> memref<!tpu.dma_semaphore, #tpu.memory_space<semaphore_mem>>
    tpu.enqueue_dma source(%60 : memref<1x128xf32, #tpu.memory_space<any>>) target(%61 : memref<1x128xf32, #tpu.memory_space<vmem>>) target_semaphore(%63 : memref<!tpu.dma_semaphore, #tpu.memory_space<semaphore_mem>>)
    %c9_i32 = arith.constant 9 : i32
    %64 = arith.addi %0, %c9_i32 : i32
    %65 = arith.index_cast %64 : i32 to index
    %66 = memref.load %arg1[%65] : memref<64xi32, #tpu.memory_space<smem>>
    %c9_i32_36 = arith.constant 9 : i32
    %c0_i32_37 = arith.constant 0 : i32
    %67 = tpu.memref_slice %arg2[%66, %c0_i32_37] : memref<512x128xf32, #tpu.memory_space<any>> -> memref<1x128xf32, #tpu.memory_space<any>>
    %c9_i32_38 = arith.constant 9 : i32
    %c0_i32_39 = arith.constant 0 : i32
    %68 = tpu.memref_slice %arg5[%c9_i32_38, %c0_i32_39] : memref<32x128xf32, #tpu.memory_space<vmem>> -> memref<1x128xf32, #tpu.memory_space<vmem>>
    %69 = tpu.memref_slice %arg6[%c9_i32_36] : memref<32x!tpu.dma_semaphore, #tpu.memory_space<semaphore_mem>> -> memref<1x!tpu.dma_semaphore, #tpu.memory_space<semaphore_mem>>
    %70 = tpu.memref_squeeze %69 : memref<1x!tpu.dma_semaphore, #tpu.memory_space<semaphore_mem>> -> memref<!tpu.dma_semaphore, #tpu.memory_space<semaphore_mem>>
    tpu.enqueue_dma source(%67 : memref<1x128xf32, #tpu.memory_space<any>>) target(%68 : memref<1x128xf32, #tpu.memory_space<vmem>>) target_semaphore(%70 : memref<!tpu.dma_semaphore, #tpu.memory_space<semaphore_mem>>)
    %c10_i32 = arith.constant 10 : i32
    %71 = arith.addi %0, %c10_i32 : i32
    %72 = arith.index_cast %71 : i32 to index
    %73 = memref.load %arg1[%72] : memref<64xi32, #tpu.memory_space<smem>>
    %c10_i32_40 = arith.constant 10 : i32
    %c0_i32_41 = arith.constant 0 : i32
    %74 = tpu.memref_slice %arg2[%73, %c0_i32_41] : memref<512x128xf32, #tpu.memory_space<any>> -> memref<1x128xf32, #tpu.memory_space<any>>
    %c10_i32_42 = arith.constant 10 : i32
    %c0_i32_43 = arith.constant 0 : i32
    %75 = tpu.memref_slice %arg5[%c10_i32_42, %c0_i32_43] : memref<32x128xf32, #tpu.memory_space<vmem>> -> memref<1x128xf32, #tpu.memory_space<vmem>>
    %76 = tpu.memref_slice %arg6[%c10_i32_40] : memref<32x!tpu.dma_semaphore, #tpu.memory_space<semaphore_mem>> -> memref<1x!tpu.dma_semaphore, #tpu.memory_space<semaphore_mem>>
    %77 = tpu.memref_squeeze %76 : memref<1x!tpu.dma_semaphore, #tpu.memory_space<semaphore_mem>> -> memref<!tpu.dma_semaphore, #tpu.memory_space<semaphore_mem>>
    tpu.enqueue_dma source(%74 : memref<1x128xf32, #tpu.memory_space<any>>) target(%75 : memref<1x128xf32, #tpu.memory_space<vmem>>) target_semaphore(%77 : memref<!tpu.dma_semaphore, #tpu.memory_space<semaphore_mem>>)
    %c11_i32 = arith.constant 11 : i32
    %78 = arith.addi %0, %c11_i32 : i32
    %79 = arith.index_cast %78 : i32 to index
    %80 = memref.load %arg1[%79] : memref<64xi32, #tpu.memory_space<smem>>
    %c11_i32_44 = arith.constant 11 : i32
    %c0_i32_45 = arith.constant 0 : i32
    %81 = tpu.memref_slice %arg2[%80, %c0_i32_45] : memref<512x128xf32, #tpu.memory_space<any>> -> memref<1x128xf32, #tpu.memory_space<any>>
    %c11_i32_46 = arith.constant 11 : i32
    %c0_i32_47 = arith.constant 0 : i32
    %82 = tpu.memref_slice %arg5[%c11_i32_46, %c0_i32_47] : memref<32x128xf32, #tpu.memory_space<vmem>> -> memref<1x128xf32, #tpu.memory_space<vmem>>
    %83 = tpu.memref_slice %arg6[%c11_i32_44] : memref<32x!tpu.dma_semaphore, #tpu.memory_space<semaphore_mem>> -> memref<1x!tpu.dma_semaphore, #tpu.memory_space<semaphore_mem>>
    %84 = tpu.memref_squeeze %83 : memref<1x!tpu.dma_semaphore, #tpu.memory_space<semaphore_mem>> -> memref<!tpu.dma_semaphore, #tpu.memory_space<semaphore_mem>>
    tpu.enqueue_dma source(%81 : memref<1x128xf32, #tpu.memory_space<any>>) target(%82 : memref<1x128xf32, #tpu.memory_space<vmem>>) target_semaphore(%84 : memref<!tpu.dma_semaphore, #tpu.memory_space<semaphore_mem>>)
    %c12_i32 = arith.constant 12 : i32
    %85 = arith.addi %0, %c12_i32 : i32
    %86 = arith.index_cast %85 : i32 to index
    %87 = memref.load %arg1[%86] : memref<64xi32, #tpu.memory_space<smem>>
    %c12_i32_48 = arith.constant 12 : i32
    %c0_i32_49 = arith.constant 0 : i32
    %88 = tpu.memref_slice %arg2[%87, %c0_i32_49] : memref<512x128xf32, #tpu.memory_space<any>> -> memref<1x128xf32, #tpu.memory_space<any>>
    %c12_i32_50 = arith.constant 12 : i32
    %c0_i32_51 = arith.constant 0 : i32
    %89 = tpu.memref_slice %arg5[%c12_i32_50, %c0_i32_51] : memref<32x128xf32, #tpu.memory_space<vmem>> -> memref<1x128xf32, #tpu.memory_space<vmem>>
    %90 = tpu.memref_slice %arg6[%c12_i32_48] : memref<32x!tpu.dma_semaphore, #tpu.memory_space<semaphore_mem>> -> memref<1x!tpu.dma_semaphore, #tpu.memory_space<semaphore_mem>>
    %91 = tpu.memref_squeeze %90 : memref<1x!tpu.dma_semaphore, #tpu.memory_space<semaphore_mem>> -> memref<!tpu.dma_semaphore, #tpu.memory_space<semaphore_mem>>
    tpu.enqueue_dma source(%88 : memref<1x128xf32, #tpu.memory_space<any>>) target(%89 : memref<1x128xf32, #tpu.memory_space<vmem>>) target_semaphore(%91 : memref<!tpu.dma_semaphore, #tpu.memory_space<semaphore_mem>>)
    %c13_i32 = arith.constant 13 : i32
    %92 = arith.addi %0, %c13_i32 : i32
    %93 = arith.index_cast %92 : i32 to index
    %94 = memref.load %arg1[%93] : memref<64xi32, #tpu.memory_space<smem>>
    %c13_i32_52 = arith.constant 13 : i32
    %c0_i32_53 = arith.constant 0 : i32
    %95 = tpu.memref_slice %arg2[%94, %c0_i32_53] : memref<512x128xf32, #tpu.memory_space<any>> -> memref<1x128xf32, #tpu.memory_space<any>>
    %c13_i32_54 = arith.constant 13 : i32
    %c0_i32_55 = arith.constant 0 : i32
    %96 = tpu.memref_slice %arg5[%c13_i32_54, %c0_i32_55] : memref<32x128xf32, #tpu.memory_space<vmem>> -> memref<1x128xf32, #tpu.memory_space<vmem>>
    %97 = tpu.memref_slice %arg6[%c13_i32_52] : memref<32x!tpu.dma_semaphore, #tpu.memory_space<semaphore_mem>> -> memref<1x!tpu.dma_semaphore, #tpu.memory_space<semaphore_mem>>
    %98 = tpu.memref_squeeze %97 : memref<1x!tpu.dma_semaphore, #tpu.memory_space<semaphore_mem>> -> memref<!tpu.dma_semaphore, #tpu.memory_space<semaphore_mem>>
    tpu.enqueue_dma source(%95 : memref<1x128xf32, #tpu.memory_space<any>>) target(%96 : memref<1x128xf32, #tpu.memory_space<vmem>>) target_semaphore(%98 : memref<!tpu.dma_semaphore, #tpu.memory_space<semaphore_mem>>)
    %c14_i32 = arith.constant 14 : i32
    %99 = arith.addi %0, %c14_i32 : i32
    %100 = arith.index_cast %99 : i32 to index
    %101 = memref.load %arg1[%100] : memref<64xi32, #tpu.memory_space<smem>>
    %c14_i32_56 = arith.constant 14 : i32
    %c0_i32_57 = arith.constant 0 : i32
    %102 = tpu.memref_slice %arg2[%101, %c0_i32_57] : memref<512x128xf32, #tpu.memory_space<any>> -> memref<1x128xf32, #tpu.memory_space<any>>
    %c14_i32_58 = arith.constant 14 : i32
    %c0_i32_59 = arith.constant 0 : i32
    %103 = tpu.memref_slice %arg5[%c14_i32_58, %c0_i32_59] : memref<32x128xf32, #tpu.memory_space<vmem>> -> memref<1x128xf32, #tpu.memory_space<vmem>>
    %104 = tpu.memref_slice %arg6[%c14_i32_56] : memref<32x!tpu.dma_semaphore, #tpu.memory_space<semaphore_mem>> -> memref<1x!tpu.dma_semaphore, #tpu.memory_space<semaphore_mem>>
    %105 = tpu.memref_squeeze %104 : memref<1x!tpu.dma_semaphore, #tpu.memory_space<semaphore_mem>> -> memref<!tpu.dma_semaphore, #tpu.memory_space<semaphore_mem>>
    tpu.enqueue_dma source(%102 : memref<1x128xf32, #tpu.memory_space<any>>) target(%103 : memref<1x128xf32, #tpu.memory_space<vmem>>) target_semaphore(%105 : memref<!tpu.dma_semaphore, #tpu.memory_space<semaphore_mem>>)
    %c15_i32 = arith.constant 15 : i32
    %106 = arith.addi %0, %c15_i32 : i32
    %107 = arith.index_cast %106 : i32 to index
    %108 = memref.load %arg1[%107] : memref<64xi32, #tpu.memory_space<smem>>
    %c15_i32_60 = arith.constant 15 : i32
    %c0_i32_61 = arith.constant 0 : i32
    %109 = tpu.memref_slice %arg2[%108, %c0_i32_61] : memref<512x128xf32, #tpu.memory_space<any>> -> memref<1x128xf32, #tpu.memory_space<any>>
    %c15_i32_62 = arith.constant 15 : i32
    %c0_i32_63 = arith.constant 0 : i32
    %110 = tpu.memref_slice %arg5[%c15_i32_62, %c0_i32_63] : memref<32x128xf32, #tpu.memory_space<vmem>> -> memref<1x128xf32, #tpu.memory_space<vmem>>
    %111 = tpu.memref_slice %arg6[%c15_i32_60] : memref<32x!tpu.dma_semaphore, #tpu.memory_space<semaphore_mem>> -> memref<1x!tpu.dma_semaphore, #tpu.memory_space<semaphore_mem>>
    %112 = tpu.memref_squeeze %111 : memref<1x!tpu.dma_semaphore, #tpu.memory_space<semaphore_mem>> -> memref<!tpu.dma_semaphore, #tpu.memory_space<semaphore_mem>>
    tpu.enqueue_dma source(%109 : memref<1x128xf32, #tpu.memory_space<any>>) target(%110 : memref<1x128xf32, #tpu.memory_space<vmem>>) target_semaphore(%112 : memref<!tpu.dma_semaphore, #tpu.memory_space<semaphore_mem>>)
    %c16_i32 = arith.constant 16 : i32
    %113 = arith.addi %0, %c16_i32 : i32
    %114 = arith.index_cast %113 : i32 to index
    %115 = memref.load %arg1[%114] : memref<64xi32, #tpu.memory_space<smem>>
    %c16_i32_64 = arith.constant 16 : i32
    %c0_i32_65 = arith.constant 0 : i32
    %116 = tpu.memref_slice %arg2[%115, %c0_i32_65] : memref<512x128xf32, #tpu.memory_space<any>> -> memref<1x128xf32, #tpu.memory_space<any>>
    %c16_i32_66 = arith.constant 16 : i32
    %c0_i32_67 = arith.constant 0 : i32
    %117 = tpu.memref_slice %arg5[%c16_i32_66, %c0_i32_67] : memref<32x128xf32, #tpu.memory_space<vmem>> -> memref<1x128xf32, #tpu.memory_space<vmem>>
    %118 = tpu.memref_slice %arg6[%c16_i32_64] : memref<32x!tpu.dma_semaphore, #tpu.memory_space<semaphore_mem>> -> memref<1x!tpu.dma_semaphore, #tpu.memory_space<semaphore_mem>>
    %119 = tpu.memref_squeeze %118 : memref<1x!tpu.dma_semaphore, #tpu.memory_space<semaphore_mem>> -> memref<!tpu.dma_semaphore, #tpu.memory_space<semaphore_mem>>
    tpu.enqueue_dma source(%116 : memref<1x128xf32, #tpu.memory_space<any>>) target(%117 : memref<1x128xf32, #tpu.memory_space<vmem>>) target_semaphore(%119 : memref<!tpu.dma_semaphore, #tpu.memory_space<semaphore_mem>>)
    %c17_i32 = arith.constant 17 : i32
    %120 = arith.addi %0, %c17_i32 : i32
    %121 = arith.index_cast %120 : i32 to index
    %122 = memref.load %arg1[%121] : memref<64xi32, #tpu.memory_space<smem>>
    %c17_i32_68 = arith.constant 17 : i32
    %c0_i32_69 = arith.constant 0 : i32
    %123 = tpu.memref_slice %arg2[%122, %c0_i32_69] : memref<512x128xf32, #tpu.memory_space<any>> -> memref<1x128xf32, #tpu.memory_space<any>>
    %c17_i32_70 = arith.constant 17 : i32
    %c0_i32_71 = arith.constant 0 : i32
    %124 = tpu.memref_slice %arg5[%c17_i32_70, %c0_i32_71] : memref<32x128xf32, #tpu.memory_space<vmem>> -> memref<1x128xf32, #tpu.memory_space<vmem>>
    %125 = tpu.memref_slice %arg6[%c17_i32_68] : memref<32x!tpu.dma_semaphore, #tpu.memory_space<semaphore_mem>> -> memref<1x!tpu.dma_semaphore, #tpu.memory_space<semaphore_mem>>
    %126 = tpu.memref_squeeze %125 : memref<1x!tpu.dma_semaphore, #tpu.memory_space<semaphore_mem>> -> memref<!tpu.dma_semaphore, #tpu.memory_space<semaphore_mem>>
    tpu.enqueue_dma source(%123 : memref<1x128xf32, #tpu.memory_space<any>>) target(%124 : memref<1x128xf32, #tpu.memory_space<vmem>>) target_semaphore(%126 : memref<!tpu.dma_semaphore, #tpu.memory_space<semaphore_mem>>)
    %c18_i32 = arith.constant 18 : i32
    %127 = arith.addi %0, %c18_i32 : i32
    %128 = arith.index_cast %127 : i32 to index
    %129 = memref.load %arg1[%128] : memref<64xi32, #tpu.memory_space<smem>>
    %c18_i32_72 = arith.constant 18 : i32
    %c0_i32_73 = arith.constant 0 : i32
    %130 = tpu.memref_slice %arg2[%129, %c0_i32_73] : memref<512x128xf32, #tpu.memory_space<any>> -> memref<1x128xf32, #tpu.memory_space<any>>
    %c18_i32_74 = arith.constant 18 : i32
    %c0_i32_75 = arith.constant 0 : i32
    %131 = tpu.memref_slice %arg5[%c18_i32_74, %c0_i32_75] : memref<32x128xf32, #tpu.memory_space<vmem>> -> memref<1x128xf32, #tpu.memory_space<vmem>>
    %132 = tpu.memref_slice %arg6[%c18_i32_72] : memref<32x!tpu.dma_semaphore, #tpu.memory_space<semaphore_mem>> -> memref<1x!tpu.dma_semaphore, #tpu.memory_space<semaphore_mem>>
    %133 = tpu.memref_squeeze %132 : memref<1x!tpu.dma_semaphore, #tpu.memory_space<semaphore_mem>> -> memref<!tpu.dma_semaphore, #tpu.memory_space<semaphore_mem>>
    tpu.enqueue_dma source(%130 : memref<1x128xf32, #tpu.memory_space<any>>) target(%131 : memref<1x128xf32, #tpu.memory_space<vmem>>) target_semaphore(%133 : memref<!tpu.dma_semaphore, #tpu.memory_space<semaphore_mem>>)
    %c19_i32 = arith.constant 19 : i32
    %134 = arith.addi %0, %c19_i32 : i32
    %135 = arith.index_cast %134 : i32 to index
    %136 = memref.load %arg1[%135] : memref<64xi32, #tpu.memory_space<smem>>
    %c19_i32_76 = arith.constant 19 : i32
    %c0_i32_77 = arith.constant 0 : i32
    %137 = tpu.memref_slice %arg2[%136, %c0_i32_77] : memref<512x128xf32, #tpu.memory_space<any>> -> memref<1x128xf32, #tpu.memory_space<any>>
    %c19_i32_78 = arith.constant 19 : i32
    %c0_i32_79 = arith.constant 0 : i32
    %138 = tpu.memref_slice %arg5[%c19_i32_78, %c0_i32_79] : memref<32x128xf32, #tpu.memory_space<vmem>> -> memref<1x128xf32, #tpu.memory_space<vmem>>
    %139 = tpu.memref_slice %arg6[%c19_i32_76] : memref<32x!tpu.dma_semaphore, #tpu.memory_space<semaphore_mem>> -> memref<1x!tpu.dma_semaphore, #tpu.memory_space<semaphore_mem>>
    %140 = tpu.memref_squeeze %139 : memref<1x!tpu.dma_semaphore, #tpu.memory_space<semaphore_mem>> -> memref<!tpu.dma_semaphore, #tpu.memory_space<semaphore_mem>>
    tpu.enqueue_dma source(%137 : memref<1x128xf32, #tpu.memory_space<any>>) target(%138 : memref<1x128xf32, #tpu.memory_space<vmem>>) target_semaphore(%140 : memref<!tpu.dma_semaphore, #tpu.memory_space<semaphore_mem>>)
    %c20_i32 = arith.constant 20 : i32
    %141 = arith.addi %0, %c20_i32 : i32
    %142 = arith.index_cast %141 : i32 to index
    %143 = memref.load %arg1[%142] : memref<64xi32, #tpu.memory_space<smem>>
    %c20_i32_80 = arith.constant 20 : i32
    %c0_i32_81 = arith.constant 0 : i32
    %144 = tpu.memref_slice %arg2[%143, %c0_i32_81] : memref<512x128xf32, #tpu.memory_space<any>> -> memref<1x128xf32, #tpu.memory_space<any>>
    %c20_i32_82 = arith.constant 20 : i32
    %c0_i32_83 = arith.constant 0 : i32
    %145 = tpu.memref_slice %arg5[%c20_i32_82, %c0_i32_83] : memref<32x128xf32, #tpu.memory_space<vmem>> -> memref<1x128xf32, #tpu.memory_space<vmem>>
    %146 = tpu.memref_slice %arg6[%c20_i32_80] : memref<32x!tpu.dma_semaphore, #tpu.memory_space<semaphore_mem>> -> memref<1x!tpu.dma_semaphore, #tpu.memory_space<semaphore_mem>>
    %147 = tpu.memref_squeeze %146 : memref<1x!tpu.dma_semaphore, #tpu.memory_space<semaphore_mem>> -> memref<!tpu.dma_semaphore, #tpu.memory_space<semaphore_mem>>
    tpu.enqueue_dma source(%144 : memref<1x128xf32, #tpu.memory_space<any>>) target(%145 : memref<1x128xf32, #tpu.memory_space<vmem>>) target_semaphore(%147 : memref<!tpu.dma_semaphore, #tpu.memory_space<semaphore_mem>>)
    %c21_i32 = arith.constant 21 : i32
    %148 = arith.addi %0, %c21_i32 : i32
    %149 = arith.index_cast %148 : i32 to index
    %150 = memref.load %arg1[%149] : memref<64xi32, #tpu.memory_space<smem>>
    %c21_i32_84 = arith.constant 21 : i32
    %c0_i32_85 = arith.constant 0 : i32
    %151 = tpu.memref_slice %arg2[%150, %c0_i32_85] : memref<512x128xf32, #tpu.memory_space<any>> -> memref<1x128xf32, #tpu.memory_space<any>>
    %c21_i32_86 = arith.constant 21 : i32
    %c0_i32_87 = arith.constant 0 : i32
    %152 = tpu.memref_slice %arg5[%c21_i32_86, %c0_i32_87] : memref<32x128xf32, #tpu.memory_space<vmem>> -> memref<1x128xf32, #tpu.memory_space<vmem>>
    %153 = tpu.memref_slice %arg6[%c21_i32_84] : memref<32x!tpu.dma_semaphore, #tpu.memory_space<semaphore_mem>> -> memref<1x!tpu.dma_semaphore, #tpu.memory_space<semaphore_mem>>
    %154 = tpu.memref_squeeze %153 : memref<1x!tpu.dma_semaphore, #tpu.memory_space<semaphore_mem>> -> memref<!tpu.dma_semaphore, #tpu.memory_space<semaphore_mem>>
    tpu.enqueue_dma source(%151 : memref<1x128xf32, #tpu.memory_space<any>>) target(%152 : memref<1x128xf32, #tpu.memory_space<vmem>>) target_semaphore(%154 : memref<!tpu.dma_semaphore, #tpu.memory_space<semaphore_mem>>)
    %c22_i32 = arith.constant 22 : i32
    %155 = arith.addi %0, %c22_i32 : i32
    %156 = arith.index_cast %155 : i32 to index
    %157 = memref.load %arg1[%156] : memref<64xi32, #tpu.memory_space<smem>>
    %c22_i32_88 = arith.constant 22 : i32
    %c0_i32_89 = arith.constant 0 : i32
    %158 = tpu.memref_slice %arg2[%157, %c0_i32_89] : memref<512x128xf32, #tpu.memory_space<any>> -> memref<1x128xf32, #tpu.memory_space<any>>
    %c22_i32_90 = arith.constant 22 : i32
    %c0_i32_91 = arith.constant 0 : i32
    %159 = tpu.memref_slice %arg5[%c22_i32_90, %c0_i32_91] : memref<32x128xf32, #tpu.memory_space<vmem>> -> memref<1x128xf32, #tpu.memory_space<vmem>>
    %160 = tpu.memref_slice %arg6[%c22_i32_88] : memref<32x!tpu.dma_semaphore, #tpu.memory_space<semaphore_mem>> -> memref<1x!tpu.dma_semaphore, #tpu.memory_space<semaphore_mem>>
    %161 = tpu.memref_squeeze %160 : memref<1x!tpu.dma_semaphore, #tpu.memory_space<semaphore_mem>> -> memref<!tpu.dma_semaphore, #tpu.memory_space<semaphore_mem>>
    tpu.enqueue_dma source(%158 : memref<1x128xf32, #tpu.memory_space<any>>) target(%159 : memref<1x128xf32, #tpu.memory_space<vmem>>) target_semaphore(%161 : memref<!tpu.dma_semaphore, #tpu.memory_space<semaphore_mem>>)
    %c23_i32 = arith.constant 23 : i32
    %162 = arith.addi %0, %c23_i32 : i32
    %163 = arith.index_cast %162 : i32 to index
    %164 = memref.load %arg1[%163] : memref<64xi32, #tpu.memory_space<smem>>
    %c23_i32_92 = arith.constant 23 : i32
    %c0_i32_93 = arith.constant 0 : i32
    %165 = tpu.memref_slice %arg2[%164, %c0_i32_93] : memref<512x128xf32, #tpu.memory_space<any>> -> memref<1x128xf32, #tpu.memory_space<any>>
    %c23_i32_94 = arith.constant 23 : i32
    %c0_i32_95 = arith.constant 0 : i32
    %166 = tpu.memref_slice %arg5[%c23_i32_94, %c0_i32_95] : memref<32x128xf32, #tpu.memory_space<vmem>> -> memref<1x128xf32, #tpu.memory_space<vmem>>
    %167 = tpu.memref_slice %arg6[%c23_i32_92] : memref<32x!tpu.dma_semaphore, #tpu.memory_space<semaphore_mem>> -> memref<1x!tpu.dma_semaphore, #tpu.memory_space<semaphore_mem>>
    %168 = tpu.memref_squeeze %167 : memref<1x!tpu.dma_semaphore, #tpu.memory_space<semaphore_mem>> -> memref<!tpu.dma_semaphore, #tpu.memory_space<semaphore_mem>>
    tpu.enqueue_dma source(%165 : memref<1x128xf32, #tpu.memory_space<any>>) target(%166 : memref<1x128xf32, #tpu.memory_space<vmem>>) target_semaphore(%168 : memref<!tpu.dma_semaphore, #tpu.memory_space<semaphore_mem>>)
    %c24_i32 = arith.constant 24 : i32
    %169 = arith.addi %0, %c24_i32 : i32
    %170 = arith.index_cast %169 : i32 to index
    %171 = memref.load %arg1[%170] : memref<64xi32, #tpu.memory_space<smem>>
    %c24_i32_96 = arith.constant 24 : i32
    %c0_i32_97 = arith.constant 0 : i32
    %172 = tpu.memref_slice %arg2[%171, %c0_i32_97] : memref<512x128xf32, #tpu.memory_space<any>> -> memref<1x128xf32, #tpu.memory_space<any>>
    %c24_i32_98 = arith.constant 24 : i32
    %c0_i32_99 = arith.constant 0 : i32
    %173 = tpu.memref_slice %arg5[%c24_i32_98, %c0_i32_99] : memref<32x128xf32, #tpu.memory_space<vmem>> -> memref<1x128xf32, #tpu.memory_space<vmem>>
    %174 = tpu.memref_slice %arg6[%c24_i32_96] : memref<32x!tpu.dma_semaphore, #tpu.memory_space<semaphore_mem>> -> memref<1x!tpu.dma_semaphore, #tpu.memory_space<semaphore_mem>>
    %175 = tpu.memref_squeeze %174 : memref<1x!tpu.dma_semaphore, #tpu.memory_space<semaphore_mem>> -> memref<!tpu.dma_semaphore, #tpu.memory_space<semaphore_mem>>
    tpu.enqueue_dma source(%172 : memref<1x128xf32, #tpu.memory_space<any>>) target(%173 : memref<1x128xf32, #tpu.memory_space<vmem>>) target_semaphore(%175 : memref<!tpu.dma_semaphore, #tpu.memory_space<semaphore_mem>>)
    %c25_i32 = arith.constant 25 : i32
    %176 = arith.addi %0, %c25_i32 : i32
    %177 = arith.index_cast %176 : i32 to index
    %178 = memref.load %arg1[%177] : memref<64xi32, #tpu.memory_space<smem>>
    %c25_i32_100 = arith.constant 25 : i32
    %c0_i32_101 = arith.constant 0 : i32
    %179 = tpu.memref_slice %arg2[%178, %c0_i32_101] : memref<512x128xf32, #tpu.memory_space<any>> -> memref<1x128xf32, #tpu.memory_space<any>>
    %c25_i32_102 = arith.constant 25 : i32
    %c0_i32_103 = arith.constant 0 : i32
    %180 = tpu.memref_slice %arg5[%c25_i32_102, %c0_i32_103] : memref<32x128xf32, #tpu.memory_space<vmem>> -> memref<1x128xf32, #tpu.memory_space<vmem>>
    %181 = tpu.memref_slice %arg6[%c25_i32_100] : memref<32x!tpu.dma_semaphore, #tpu.memory_space<semaphore_mem>> -> memref<1x!tpu.dma_semaphore, #tpu.memory_space<semaphore_mem>>
    %182 = tpu.memref_squeeze %181 : memref<1x!tpu.dma_semaphore, #tpu.memory_space<semaphore_mem>> -> memref<!tpu.dma_semaphore, #tpu.memory_space<semaphore_mem>>
    tpu.enqueue_dma source(%179 : memref<1x128xf32, #tpu.memory_space<any>>) target(%180 : memref<1x128xf32, #tpu.memory_space<vmem>>) target_semaphore(%182 : memref<!tpu.dma_semaphore, #tpu.memory_space<semaphore_mem>>)
    %c26_i32 = arith.constant 26 : i32
    %183 = arith.addi %0, %c26_i32 : i32
    %184 = arith.index_cast %183 : i32 to index
    %185 = memref.load %arg1[%184] : memref<64xi32, #tpu.memory_space<smem>>
    %c26_i32_104 = arith.constant 26 : i32
    %c0_i32_105 = arith.constant 0 : i32
    %186 = tpu.memref_slice %arg2[%185, %c0_i32_105] : memref<512x128xf32, #tpu.memory_space<any>> -> memref<1x128xf32, #tpu.memory_space<any>>
    %c26_i32_106 = arith.constant 26 : i32
    %c0_i32_107 = arith.constant 0 : i32
    %187 = tpu.memref_slice %arg5[%c26_i32_106, %c0_i32_107] : memref<32x128xf32, #tpu.memory_space<vmem>> -> memref<1x128xf32, #tpu.memory_space<vmem>>
    %188 = tpu.memref_slice %arg6[%c26_i32_104] : memref<32x!tpu.dma_semaphore, #tpu.memory_space<semaphore_mem>> -> memref<1x!tpu.dma_semaphore, #tpu.memory_space<semaphore_mem>>
    %189 = tpu.memref_squeeze %188 : memref<1x!tpu.dma_semaphore, #tpu.memory_space<semaphore_mem>> -> memref<!tpu.dma_semaphore, #tpu.memory_space<semaphore_mem>>
    tpu.enqueue_dma source(%186 : memref<1x128xf32, #tpu.memory_space<any>>) target(%187 : memref<1x128xf32, #tpu.memory_space<vmem>>) target_semaphore(%189 : memref<!tpu.dma_semaphore, #tpu.memory_space<semaphore_mem>>)
    %c27_i32 = arith.constant 27 : i32
    %190 = arith.addi %0, %c27_i32 : i32
    %191 = arith.index_cast %190 : i32 to index
    %192 = memref.load %arg1[%191] : memref<64xi32, #tpu.memory_space<smem>>
    %c27_i32_108 = arith.constant 27 : i32
    %c0_i32_109 = arith.constant 0 : i32
    %193 = tpu.memref_slice %arg2[%192, %c0_i32_109] : memref<512x128xf32, #tpu.memory_space<any>> -> memref<1x128xf32, #tpu.memory_space<any>>
    %c27_i32_110 = arith.constant 27 : i32
    %c0_i32_111 = arith.constant 0 : i32
    %194 = tpu.memref_slice %arg5[%c27_i32_110, %c0_i32_111] : memref<32x128xf32, #tpu.memory_space<vmem>> -> memref<1x128xf32, #tpu.memory_space<vmem>>
    %195 = tpu.memref_slice %arg6[%c27_i32_108] : memref<32x!tpu.dma_semaphore, #tpu.memory_space<semaphore_mem>> -> memref<1x!tpu.dma_semaphore, #tpu.memory_space<semaphore_mem>>
    %196 = tpu.memref_squeeze %195 : memref<1x!tpu.dma_semaphore, #tpu.memory_space<semaphore_mem>> -> memref<!tpu.dma_semaphore, #tpu.memory_space<semaphore_mem>>
    tpu.enqueue_dma source(%193 : memref<1x128xf32, #tpu.memory_space<any>>) target(%194 : memref<1x128xf32, #tpu.memory_space<vmem>>) target_semaphore(%196 : memref<!tpu.dma_semaphore, #tpu.memory_space<semaphore_mem>>)
    %c28_i32 = arith.constant 28 : i32
    %197 = arith.addi %0, %c28_i32 : i32
    %198 = arith.index_cast %197 : i32 to index
    %199 = memref.load %arg1[%198] : memref<64xi32, #tpu.memory_space<smem>>
    %c28_i32_112 = arith.constant 28 : i32
    %c0_i32_113 = arith.constant 0 : i32
    %200 = tpu.memref_slice %arg2[%199, %c0_i32_113] : memref<512x128xf32, #tpu.memory_space<any>> -> memref<1x128xf32, #tpu.memory_space<any>>
    %c28_i32_114 = arith.constant 28 : i32
    %c0_i32_115 = arith.constant 0 : i32
    %201 = tpu.memref_slice %arg5[%c28_i32_114, %c0_i32_115] : memref<32x128xf32, #tpu.memory_space<vmem>> -> memref<1x128xf32, #tpu.memory_space<vmem>>
    %202 = tpu.memref_slice %arg6[%c28_i32_112] : memref<32x!tpu.dma_semaphore, #tpu.memory_space<semaphore_mem>> -> memref<1x!tpu.dma_semaphore, #tpu.memory_space<semaphore_mem>>
    %203 = tpu.memref_squeeze %202 : memref<1x!tpu.dma_semaphore, #tpu.memory_space<semaphore_mem>> -> memref<!tpu.dma_semaphore, #tpu.memory_space<semaphore_mem>>
    tpu.enqueue_dma source(%200 : memref<1x128xf32, #tpu.memory_space<any>>) target(%201 : memref<1x128xf32, #tpu.memory_space<vmem>>) target_semaphore(%203 : memref<!tpu.dma_semaphore, #tpu.memory_space<semaphore_mem>>)
    %c29_i32 = arith.constant 29 : i32
    %204 = arith.addi %0, %c29_i32 : i32
    %205 = arith.index_cast %204 : i32 to index
    %206 = memref.load %arg1[%205] : memref<64xi32, #tpu.memory_space<smem>>
    %c29_i32_116 = arith.constant 29 : i32
    %c0_i32_117 = arith.constant 0 : i32
    %207 = tpu.memref_slice %arg2[%206, %c0_i32_117] : memref<512x128xf32, #tpu.memory_space<any>> -> memref<1x128xf32, #tpu.memory_space<any>>
    %c29_i32_118 = arith.constant 29 : i32
    %c0_i32_119 = arith.constant 0 : i32
    %208 = tpu.memref_slice %arg5[%c29_i32_118, %c0_i32_119] : memref<32x128xf32, #tpu.memory_space<vmem>> -> memref<1x128xf32, #tpu.memory_space<vmem>>
    %209 = tpu.memref_slice %arg6[%c29_i32_116] : memref<32x!tpu.dma_semaphore, #tpu.memory_space<semaphore_mem>> -> memref<1x!tpu.dma_semaphore, #tpu.memory_space<semaphore_mem>>
    %210 = tpu.memref_squeeze %209 : memref<1x!tpu.dma_semaphore, #tpu.memory_space<semaphore_mem>> -> memref<!tpu.dma_semaphore, #tpu.memory_space<semaphore_mem>>
    tpu.enqueue_dma source(%207 : memref<1x128xf32, #tpu.memory_space<any>>) target(%208 : memref<1x128xf32, #tpu.memory_space<vmem>>) target_semaphore(%210 : memref<!tpu.dma_semaphore, #tpu.memory_space<semaphore_mem>>)
    %c30_i32 = arith.constant 30 : i32
    %211 = arith.addi %0, %c30_i32 : i32
    %212 = arith.index_cast %211 : i32 to index
    %213 = memref.load %arg1[%212] : memref<64xi32, #tpu.memory_space<smem>>
    %c30_i32_120 = arith.constant 30 : i32
    %c0_i32_121 = arith.constant 0 : i32
    %214 = tpu.memref_slice %arg2[%213, %c0_i32_121] : memref<512x128xf32, #tpu.memory_space<any>> -> memref<1x128xf32, #tpu.memory_space<any>>
    %c30_i32_122 = arith.constant 30 : i32
    %c0_i32_123 = arith.constant 0 : i32
    %215 = tpu.memref_slice %arg5[%c30_i32_122, %c0_i32_123] : memref<32x128xf32, #tpu.memory_space<vmem>> -> memref<1x128xf32, #tpu.memory_space<vmem>>
    %216 = tpu.memref_slice %arg6[%c30_i32_120] : memref<32x!tpu.dma_semaphore, #tpu.memory_space<semaphore_mem>> -> memref<1x!tpu.dma_semaphore, #tpu.memory_space<semaphore_mem>>
    %217 = tpu.memref_squeeze %216 : memref<1x!tpu.dma_semaphore, #tpu.memory_space<semaphore_mem>> -> memref<!tpu.dma_semaphore, #tpu.memory_space<semaphore_mem>>
    tpu.enqueue_dma source(%214 : memref<1x128xf32, #tpu.memory_space<any>>) target(%215 : memref<1x128xf32, #tpu.memory_space<vmem>>) target_semaphore(%217 : memref<!tpu.dma_semaphore, #tpu.memory_space<semaphore_mem>>)
    %c31_i32 = arith.constant 31 : i32
    %218 = arith.addi %0, %c31_i32 : i32
    %219 = arith.index_cast %218 : i32 to index
    %220 = memref.load %arg1[%219] : memref<64xi32, #tpu.memory_space<smem>>
    %c31_i32_124 = arith.constant 31 : i32
    %c0_i32_125 = arith.constant 0 : i32
    %221 = tpu.memref_slice %arg2[%220, %c0_i32_125] : memref<512x128xf32, #tpu.memory_space<any>> -> memref<1x128xf32, #tpu.memory_space<any>>
    %c31_i32_126 = arith.constant 31 : i32
    %c0_i32_127 = arith.constant 0 : i32
    %222 = tpu.memref_slice %arg5[%c31_i32_126, %c0_i32_127] : memref<32x128xf32, #tpu.memory_space<vmem>> -> memref<1x128xf32, #tpu.memory_space<vmem>>
    %223 = tpu.memref_slice %arg6[%c31_i32_124] : memref<32x!tpu.dma_semaphore, #tpu.memory_space<semaphore_mem>> -> memref<1x!tpu.dma_semaphore, #tpu.memory_space<semaphore_mem>>
    %224 = tpu.memref_squeeze %223 : memref<1x!tpu.dma_semaphore, #tpu.memory_space<semaphore_mem>> -> memref<!tpu.dma_semaphore, #tpu.memory_space<semaphore_mem>>
    tpu.enqueue_dma source(%221 : memref<1x128xf32, #tpu.memory_space<any>>) target(%222 : memref<1x128xf32, #tpu.memory_space<vmem>>) target_semaphore(%224 : memref<!tpu.dma_semaphore, #tpu.memory_space<semaphore_mem>>)
    %c0_i32_128 = arith.constant 0 : i32
    %c0_i32_129 = arith.constant 0 : i32
    %c0_i32_130 = arith.constant 0 : i32
    %225 = tpu.memref_slice %arg2[%c0_i32_129, %c0_i32_130] : memref<512x128xf32, #tpu.memory_space<any>> -> memref<1x128xf32, #tpu.memory_space<any>>
    %c0_i32_131 = arith.constant 0 : i32
    %c0_i32_132 = arith.constant 0 : i32
    %226 = tpu.memref_slice %arg5[%c0_i32_131, %c0_i32_132] : memref<32x128xf32, #tpu.memory_space<vmem>> -> memref<1x128xf32, #tpu.memory_space<vmem>>
    %227 = tpu.memref_slice %arg6[%c0_i32_128] : memref<32x!tpu.dma_semaphore, #tpu.memory_space<semaphore_mem>> -> memref<1x!tpu.dma_semaphore, #tpu.memory_space<semaphore_mem>>
    %228 = tpu.memref_squeeze %227 : memref<1x!tpu.dma_semaphore, #tpu.memory_space<semaphore_mem>> -> memref<!tpu.dma_semaphore, #tpu.memory_space<semaphore_mem>>
    tpu.wait_dma2 semaphore(%228 : memref<!tpu.dma_semaphore, #tpu.memory_space<semaphore_mem>>) src(%225 : memref<1x128xf32, #tpu.memory_space<any>>) dst(%226 : memref<1x128xf32, #tpu.memory_space<vmem>>)
    %c1_i32_133 = arith.constant 1 : i32
    %c0_i32_134 = arith.constant 0 : i32
    %c0_i32_135 = arith.constant 0 : i32
    %229 = tpu.memref_slice %arg2[%c0_i32_134, %c0_i32_135] : memref<512x128xf32, #tpu.memory_space<any>> -> memref<1x128xf32, #tpu.memory_space<any>>
    %c1_i32_136 = arith.constant 1 : i32
    %c0_i32_137 = arith.constant 0 : i32
    %230 = tpu.memref_slice %arg5[%c1_i32_136, %c0_i32_137] : memref<32x128xf32, #tpu.memory_space<vmem>> -> memref<1x128xf32, #tpu.memory_space<vmem>>
    %231 = tpu.memref_slice %arg6[%c1_i32_133] : memref<32x!tpu.dma_semaphore, #tpu.memory_space<semaphore_mem>> -> memref<1x!tpu.dma_semaphore, #tpu.memory_space<semaphore_mem>>
    %232 = tpu.memref_squeeze %231 : memref<1x!tpu.dma_semaphore, #tpu.memory_space<semaphore_mem>> -> memref<!tpu.dma_semaphore, #tpu.memory_space<semaphore_mem>>
    tpu.wait_dma2 semaphore(%232 : memref<!tpu.dma_semaphore, #tpu.memory_space<semaphore_mem>>) src(%229 : memref<1x128xf32, #tpu.memory_space<any>>) dst(%230 : memref<1x128xf32, #tpu.memory_space<vmem>>)
    %c2_i32_138 = arith.constant 2 : i32
    %c0_i32_139 = arith.constant 0 : i32
    %c0_i32_140 = arith.constant 0 : i32
    %233 = tpu.memref_slice %arg2[%c0_i32_139, %c0_i32_140] : memref<512x128xf32, #tpu.memory_space<any>> -> memref<1x128xf32, #tpu.memory_space<any>>
    %c2_i32_141 = arith.constant 2 : i32
    %c0_i32_142 = arith.constant 0 : i32
    %234 = tpu.memref_slice %arg5[%c2_i32_141, %c0_i32_142] : memref<32x128xf32, #tpu.memory_space<vmem>> -> memref<1x128xf32, #tpu.memory_space<vmem>>
    %235 = tpu.memref_slice %arg6[%c2_i32_138] : memref<32x!tpu.dma_semaphore, #tpu.memory_space<semaphore_mem>> -> memref<1x!tpu.dma_semaphore, #tpu.memory_space<semaphore_mem>>
    %236 = tpu.memref_squeeze %235 : memref<1x!tpu.dma_semaphore, #tpu.memory_space<semaphore_mem>> -> memref<!tpu.dma_semaphore, #tpu.memory_space<semaphore_mem>>
    tpu.wait_dma2 semaphore(%236 : memref<!tpu.dma_semaphore, #tpu.memory_space<semaphore_mem>>) src(%233 : memref<1x128xf32, #tpu.memory_space<any>>) dst(%234 : memref<1x128xf32, #tpu.memory_space<vmem>>)
    %c3_i32_143 = arith.constant 3 : i32
    %c0_i32_144 = arith.constant 0 : i32
    %c0_i32_145 = arith.constant 0 : i32
    %237 = tpu.memref_slice %arg2[%c0_i32_144, %c0_i32_145] : memref<512x128xf32, #tpu.memory_space<any>> -> memref<1x128xf32, #tpu.memory_space<any>>
    %c3_i32_146 = arith.constant 3 : i32
    %c0_i32_147 = arith.constant 0 : i32
    %238 = tpu.memref_slice %arg5[%c3_i32_146, %c0_i32_147] : memref<32x128xf32, #tpu.memory_space<vmem>> -> memref<1x128xf32, #tpu.memory_space<vmem>>
    %239 = tpu.memref_slice %arg6[%c3_i32_143] : memref<32x!tpu.dma_semaphore, #tpu.memory_space<semaphore_mem>> -> memref<1x!tpu.dma_semaphore, #tpu.memory_space<semaphore_mem>>
    %240 = tpu.memref_squeeze %239 : memref<1x!tpu.dma_semaphore, #tpu.memory_space<semaphore_mem>> -> memref<!tpu.dma_semaphore, #tpu.memory_space<semaphore_mem>>
    tpu.wait_dma2 semaphore(%240 : memref<!tpu.dma_semaphore, #tpu.memory_space<semaphore_mem>>) src(%237 : memref<1x128xf32, #tpu.memory_space<any>>) dst(%238 : memref<1x128xf32, #tpu.memory_space<vmem>>)
    %c4_i32_148 = arith.constant 4 : i32
    %c0_i32_149 = arith.constant 0 : i32
    %c0_i32_150 = arith.constant 0 : i32
    %241 = tpu.memref_slice %arg2[%c0_i32_149, %c0_i32_150] : memref<512x128xf32, #tpu.memory_space<any>> -> memref<1x128xf32, #tpu.memory_space<any>>
    %c4_i32_151 = arith.constant 4 : i32
    %c0_i32_152 = arith.constant 0 : i32
    %242 = tpu.memref_slice %arg5[%c4_i32_151, %c0_i32_152] : memref<32x128xf32, #tpu.memory_space<vmem>> -> memref<1x128xf32, #tpu.memory_space<vmem>>
    %243 = tpu.memref_slice %arg6[%c4_i32_148] : memref<32x!tpu.dma_semaphore, #tpu.memory_space<semaphore_mem>> -> memref<1x!tpu.dma_semaphore, #tpu.memory_space<semaphore_mem>>
    %244 = tpu.memref_squeeze %243 : memref<1x!tpu.dma_semaphore, #tpu.memory_space<semaphore_mem>> -> memref<!tpu.dma_semaphore, #tpu.memory_space<semaphore_mem>>
    tpu.wait_dma2 semaphore(%244 : memref<!tpu.dma_semaphore, #tpu.memory_space<semaphore_mem>>) src(%241 : memref<1x128xf32, #tpu.memory_space<any>>) dst(%242 : memref<1x128xf32, #tpu.memory_space<vmem>>)
    %c5_i32_153 = arith.constant 5 : i32
    %c0_i32_154 = arith.constant 0 : i32
    %c0_i32_155 = arith.constant 0 : i32
    %245 = tpu.memref_slice %arg2[%c0_i32_154, %c0_i32_155] : memref<512x128xf32, #tpu.memory_space<any>> -> memref<1x128xf32, #tpu.memory_space<any>>
    %c5_i32_156 = arith.constant 5 : i32
    %c0_i32_157 = arith.constant 0 : i32
    %246 = tpu.memref_slice %arg5[%c5_i32_156, %c0_i32_157] : memref<32x128xf32, #tpu.memory_space<vmem>> -> memref<1x128xf32, #tpu.memory_space<vmem>>
    %247 = tpu.memref_slice %arg6[%c5_i32_153] : memref<32x!tpu.dma_semaphore, #tpu.memory_space<semaphore_mem>> -> memref<1x!tpu.dma_semaphore, #tpu.memory_space<semaphore_mem>>
    %248 = tpu.memref_squeeze %247 : memref<1x!tpu.dma_semaphore, #tpu.memory_space<semaphore_mem>> -> memref<!tpu.dma_semaphore, #tpu.memory_space<semaphore_mem>>
    tpu.wait_dma2 semaphore(%248 : memref<!tpu.dma_semaphore, #tpu.memory_space<semaphore_mem>>) src(%245 : memref<1x128xf32, #tpu.memory_space<any>>) dst(%246 : memref<1x128xf32, #tpu.memory_space<vmem>>)
    %c6_i32_158 = arith.constant 6 : i32
    %c0_i32_159 = arith.constant 0 : i32
    %c0_i32_160 = arith.constant 0 : i32
    %249 = tpu.memref_slice %arg2[%c0_i32_159, %c0_i32_160] : memref<512x128xf32, #tpu.memory_space<any>> -> memref<1x128xf32, #tpu.memory_space<any>>
    %c6_i32_161 = arith.constant 6 : i32
    %c0_i32_162 = arith.constant 0 : i32
    %250 = tpu.memref_slice %arg5[%c6_i32_161, %c0_i32_162] : memref<32x128xf32, #tpu.memory_space<vmem>> -> memref<1x128xf32, #tpu.memory_space<vmem>>
    %251 = tpu.memref_slice %arg6[%c6_i32_158] : memref<32x!tpu.dma_semaphore, #tpu.memory_space<semaphore_mem>> -> memref<1x!tpu.dma_semaphore, #tpu.memory_space<semaphore_mem>>
    %252 = tpu.memref_squeeze %251 : memref<1x!tpu.dma_semaphore, #tpu.memory_space<semaphore_mem>> -> memref<!tpu.dma_semaphore, #tpu.memory_space<semaphore_mem>>
    tpu.wait_dma2 semaphore(%252 : memref<!tpu.dma_semaphore, #tpu.memory_space<semaphore_mem>>) src(%249 : memref<1x128xf32, #tpu.memory_space<any>>) dst(%250 : memref<1x128xf32, #tpu.memory_space<vmem>>)
    %c7_i32_163 = arith.constant 7 : i32
    %c0_i32_164 = arith.constant 0 : i32
    %c0_i32_165 = arith.constant 0 : i32
    %253 = tpu.memref_slice %arg2[%c0_i32_164, %c0_i32_165] : memref<512x128xf32, #tpu.memory_space<any>> -> memref<1x128xf32, #tpu.memory_space<any>>
    %c7_i32_166 = arith.constant 7 : i32
    %c0_i32_167 = arith.constant 0 : i32
    %254 = tpu.memref_slice %arg5[%c7_i32_166, %c0_i32_167] : memref<32x128xf32, #tpu.memory_space<vmem>> -> memref<1x128xf32, #tpu.memory_space<vmem>>
    %255 = tpu.memref_slice %arg6[%c7_i32_163] : memref<32x!tpu.dma_semaphore, #tpu.memory_space<semaphore_mem>> -> memref<1x!tpu.dma_semaphore, #tpu.memory_space<semaphore_mem>>
    %256 = tpu.memref_squeeze %255 : memref<1x!tpu.dma_semaphore, #tpu.memory_space<semaphore_mem>> -> memref<!tpu.dma_semaphore, #tpu.memory_space<semaphore_mem>>
    tpu.wait_dma2 semaphore(%256 : memref<!tpu.dma_semaphore, #tpu.memory_space<semaphore_mem>>) src(%253 : memref<1x128xf32, #tpu.memory_space<any>>) dst(%254 : memref<1x128xf32, #tpu.memory_space<vmem>>)
    %c8_i32_168 = arith.constant 8 : i32
    %c0_i32_169 = arith.constant 0 : i32
    %c0_i32_170 = arith.constant 0 : i32
    %257 = tpu.memref_slice %arg2[%c0_i32_169, %c0_i32_170] : memref<512x128xf32, #tpu.memory_space<any>> -> memref<1x128xf32, #tpu.memory_space<any>>
    %c8_i32_171 = arith.constant 8 : i32
    %c0_i32_172 = arith.constant 0 : i32
    %258 = tpu.memref_slice %arg5[%c8_i32_171, %c0_i32_172] : memref<32x128xf32, #tpu.memory_space<vmem>> -> memref<1x128xf32, #tpu.memory_space<vmem>>
    %259 = tpu.memref_slice %arg6[%c8_i32_168] : memref<32x!tpu.dma_semaphore, #tpu.memory_space<semaphore_mem>> -> memref<1x!tpu.dma_semaphore, #tpu.memory_space<semaphore_mem>>
    %260 = tpu.memref_squeeze %259 : memref<1x!tpu.dma_semaphore, #tpu.memory_space<semaphore_mem>> -> memref<!tpu.dma_semaphore, #tpu.memory_space<semaphore_mem>>
    tpu.wait_dma2 semaphore(%260 : memref<!tpu.dma_semaphore, #tpu.memory_space<semaphore_mem>>) src(%257 : memref<1x128xf32, #tpu.memory_space<any>>) dst(%258 : memref<1x128xf32, #tpu.memory_space<vmem>>)
    %c9_i32_173 = arith.constant 9 : i32
    %c0_i32_174 = arith.constant 0 : i32
    %c0_i32_175 = arith.constant 0 : i32
    %261 = tpu.memref_slice %arg2[%c0_i32_174, %c0_i32_175] : memref<512x128xf32, #tpu.memory_space<any>> -> memref<1x128xf32, #tpu.memory_space<any>>
    %c9_i32_176 = arith.constant 9 : i32
    %c0_i32_177 = arith.constant 0 : i32
    %262 = tpu.memref_slice %arg5[%c9_i32_176, %c0_i32_177] : memref<32x128xf32, #tpu.memory_space<vmem>> -> memref<1x128xf32, #tpu.memory_space<vmem>>
    %263 = tpu.memref_slice %arg6[%c9_i32_173] : memref<32x!tpu.dma_semaphore, #tpu.memory_space<semaphore_mem>> -> memref<1x!tpu.dma_semaphore, #tpu.memory_space<semaphore_mem>>
    %264 = tpu.memref_squeeze %263 : memref<1x!tpu.dma_semaphore, #tpu.memory_space<semaphore_mem>> -> memref<!tpu.dma_semaphore, #tpu.memory_space<semaphore_mem>>
    tpu.wait_dma2 semaphore(%264 : memref<!tpu.dma_semaphore, #tpu.memory_space<semaphore_mem>>) src(%261 : memref<1x128xf32, #tpu.memory_space<any>>) dst(%262 : memref<1x128xf32, #tpu.memory_space<vmem>>)
    %c10_i32_178 = arith.constant 10 : i32
    %c0_i32_179 = arith.constant 0 : i32
    %c0_i32_180 = arith.constant 0 : i32
    %265 = tpu.memref_slice %arg2[%c0_i32_179, %c0_i32_180] : memref<512x128xf32, #tpu.memory_space<any>> -> memref<1x128xf32, #tpu.memory_space<any>>
    %c10_i32_181 = arith.constant 10 : i32
    %c0_i32_182 = arith.constant 0 : i32
    %266 = tpu.memref_slice %arg5[%c10_i32_181, %c0_i32_182] : memref<32x128xf32, #tpu.memory_space<vmem>> -> memref<1x128xf32, #tpu.memory_space<vmem>>
    %267 = tpu.memref_slice %arg6[%c10_i32_178] : memref<32x!tpu.dma_semaphore, #tpu.memory_space<semaphore_mem>> -> memref<1x!tpu.dma_semaphore, #tpu.memory_space<semaphore_mem>>
    %268 = tpu.memref_squeeze %267 : memref<1x!tpu.dma_semaphore, #tpu.memory_space<semaphore_mem>> -> memref<!tpu.dma_semaphore, #tpu.memory_space<semaphore_mem>>
    tpu.wait_dma2 semaphore(%268 : memref<!tpu.dma_semaphore, #tpu.memory_space<semaphore_mem>>) src(%265 : memref<1x128xf32, #tpu.memory_space<any>>) dst(%266 : memref<1x128xf32, #tpu.memory_space<vmem>>)
    %c11_i32_183 = arith.constant 11 : i32
    %c0_i32_184 = arith.constant 0 : i32
    %c0_i32_185 = arith.constant 0 : i32
    %269 = tpu.memref_slice %arg2[%c0_i32_184, %c0_i32_185] : memref<512x128xf32, #tpu.memory_space<any>> -> memref<1x128xf32, #tpu.memory_space<any>>
    %c11_i32_186 = arith.constant 11 : i32
    %c0_i32_187 = arith.constant 0 : i32
    %270 = tpu.memref_slice %arg5[%c11_i32_186, %c0_i32_187] : memref<32x128xf32, #tpu.memory_space<vmem>> -> memref<1x128xf32, #tpu.memory_space<vmem>>
    %271 = tpu.memref_slice %arg6[%c11_i32_183] : memref<32x!tpu.dma_semaphore, #tpu.memory_space<semaphore_mem>> -> memref<1x!tpu.dma_semaphore, #tpu.memory_space<semaphore_mem>>
    %272 = tpu.memref_squeeze %271 : memref<1x!tpu.dma_semaphore, #tpu.memory_space<semaphore_mem>> -> memref<!tpu.dma_semaphore, #tpu.memory_space<semaphore_mem>>
    tpu.wait_dma2 semaphore(%272 : memref<!tpu.dma_semaphore, #tpu.memory_space<semaphore_mem>>) src(%269 : memref<1x128xf32, #tpu.memory_space<any>>) dst(%270 : memref<1x128xf32, #tpu.memory_space<vmem>>)
    %c12_i32_188 = arith.constant 12 : i32
    %c0_i32_189 = arith.constant 0 : i32
    %c0_i32_190 = arith.constant 0 : i32
    %273 = tpu.memref_slice %arg2[%c0_i32_189, %c0_i32_190] : memref<512x128xf32, #tpu.memory_space<any>> -> memref<1x128xf32, #tpu.memory_space<any>>
    %c12_i32_191 = arith.constant 12 : i32
    %c0_i32_192 = arith.constant 0 : i32
    %274 = tpu.memref_slice %arg5[%c12_i32_191, %c0_i32_192] : memref<32x128xf32, #tpu.memory_space<vmem>> -> memref<1x128xf32, #tpu.memory_space<vmem>>
    %275 = tpu.memref_slice %arg6[%c12_i32_188] : memref<32x!tpu.dma_semaphore, #tpu.memory_space<semaphore_mem>> -> memref<1x!tpu.dma_semaphore, #tpu.memory_space<semaphore_mem>>
    %276 = tpu.memref_squeeze %275 : memref<1x!tpu.dma_semaphore, #tpu.memory_space<semaphore_mem>> -> memref<!tpu.dma_semaphore, #tpu.memory_space<semaphore_mem>>
    tpu.wait_dma2 semaphore(%276 : memref<!tpu.dma_semaphore, #tpu.memory_space<semaphore_mem>>) src(%273 : memref<1x128xf32, #tpu.memory_space<any>>) dst(%274 : memref<1x128xf32, #tpu.memory_space<vmem>>)
    %c13_i32_193 = arith.constant 13 : i32
    %c0_i32_194 = arith.constant 0 : i32
    %c0_i32_195 = arith.constant 0 : i32
    %277 = tpu.memref_slice %arg2[%c0_i32_194, %c0_i32_195] : memref<512x128xf32, #tpu.memory_space<any>> -> memref<1x128xf32, #tpu.memory_space<any>>
    %c13_i32_196 = arith.constant 13 : i32
    %c0_i32_197 = arith.constant 0 : i32
    %278 = tpu.memref_slice %arg5[%c13_i32_196, %c0_i32_197] : memref<32x128xf32, #tpu.memory_space<vmem>> -> memref<1x128xf32, #tpu.memory_space<vmem>>
    %279 = tpu.memref_slice %arg6[%c13_i32_193] : memref<32x!tpu.dma_semaphore, #tpu.memory_space<semaphore_mem>> -> memref<1x!tpu.dma_semaphore, #tpu.memory_space<semaphore_mem>>
    %280 = tpu.memref_squeeze %279 : memref<1x!tpu.dma_semaphore, #tpu.memory_space<semaphore_mem>> -> memref<!tpu.dma_semaphore, #tpu.memory_space<semaphore_mem>>
    tpu.wait_dma2 semaphore(%280 : memref<!tpu.dma_semaphore, #tpu.memory_space<semaphore_mem>>) src(%277 : memref<1x128xf32, #tpu.memory_space<any>>) dst(%278 : memref<1x128xf32, #tpu.memory_space<vmem>>)
    %c14_i32_198 = arith.constant 14 : i32
    %c0_i32_199 = arith.constant 0 : i32
    %c0_i32_200 = arith.constant 0 : i32
    %281 = tpu.memref_slice %arg2[%c0_i32_199, %c0_i32_200] : memref<512x128xf32, #tpu.memory_space<any>> -> memref<1x128xf32, #tpu.memory_space<any>>
    %c14_i32_201 = arith.constant 14 : i32
    %c0_i32_202 = arith.constant 0 : i32
    %282 = tpu.memref_slice %arg5[%c14_i32_201, %c0_i32_202] : memref<32x128xf32, #tpu.memory_space<vmem>> -> memref<1x128xf32, #tpu.memory_space<vmem>>
    %283 = tpu.memref_slice %arg6[%c14_i32_198] : memref<32x!tpu.dma_semaphore, #tpu.memory_space<semaphore_mem>> -> memref<1x!tpu.dma_semaphore, #tpu.memory_space<semaphore_mem>>
    %284 = tpu.memref_squeeze %283 : memref<1x!tpu.dma_semaphore, #tpu.memory_space<semaphore_mem>> -> memref<!tpu.dma_semaphore, #tpu.memory_space<semaphore_mem>>
    tpu.wait_dma2 semaphore(%284 : memref<!tpu.dma_semaphore, #tpu.memory_space<semaphore_mem>>) src(%281 : memref<1x128xf32, #tpu.memory_space<any>>) dst(%282 : memref<1x128xf32, #tpu.memory_space<vmem>>)
    %c15_i32_203 = arith.constant 15 : i32
    %c0_i32_204 = arith.constant 0 : i32
    %c0_i32_205 = arith.constant 0 : i32
    %285 = tpu.memref_slice %arg2[%c0_i32_204, %c0_i32_205] : memref<512x128xf32, #tpu.memory_space<any>> -> memref<1x128xf32, #tpu.memory_space<any>>
    %c15_i32_206 = arith.constant 15 : i32
    %c0_i32_207 = arith.constant 0 : i32
    %286 = tpu.memref_slice %arg5[%c15_i32_206, %c0_i32_207] : memref<32x128xf32, #tpu.memory_space<vmem>> -> memref<1x128xf32, #tpu.memory_space<vmem>>
    %287 = tpu.memref_slice %arg6[%c15_i32_203] : memref<32x!tpu.dma_semaphore, #tpu.memory_space<semaphore_mem>> -> memref<1x!tpu.dma_semaphore, #tpu.memory_space<semaphore_mem>>
    %288 = tpu.memref_squeeze %287 : memref<1x!tpu.dma_semaphore, #tpu.memory_space<semaphore_mem>> -> memref<!tpu.dma_semaphore, #tpu.memory_space<semaphore_mem>>
    tpu.wait_dma2 semaphore(%288 : memref<!tpu.dma_semaphore, #tpu.memory_space<semaphore_mem>>) src(%285 : memref<1x128xf32, #tpu.memory_space<any>>) dst(%286 : memref<1x128xf32, #tpu.memory_space<vmem>>)
    %c16_i32_208 = arith.constant 16 : i32
    %c0_i32_209 = arith.constant 0 : i32
    %c0_i32_210 = arith.constant 0 : i32
    %289 = tpu.memref_slice %arg2[%c0_i32_209, %c0_i32_210] : memref<512x128xf32, #tpu.memory_space<any>> -> memref<1x128xf32, #tpu.memory_space<any>>
    %c16_i32_211 = arith.constant 16 : i32
    %c0_i32_212 = arith.constant 0 : i32
    %290 = tpu.memref_slice %arg5[%c16_i32_211, %c0_i32_212] : memref<32x128xf32, #tpu.memory_space<vmem>> -> memref<1x128xf32, #tpu.memory_space<vmem>>
    %291 = tpu.memref_slice %arg6[%c16_i32_208] : memref<32x!tpu.dma_semaphore, #tpu.memory_space<semaphore_mem>> -> memref<1x!tpu.dma_semaphore, #tpu.memory_space<semaphore_mem>>
    %292 = tpu.memref_squeeze %291 : memref<1x!tpu.dma_semaphore, #tpu.memory_space<semaphore_mem>> -> memref<!tpu.dma_semaphore, #tpu.memory_space<semaphore_mem>>
    tpu.wait_dma2 semaphore(%292 : memref<!tpu.dma_semaphore, #tpu.memory_space<semaphore_mem>>) src(%289 : memref<1x128xf32, #tpu.memory_space<any>>) dst(%290 : memref<1x128xf32, #tpu.memory_space<vmem>>)
    %c17_i32_213 = arith.constant 17 : i32
    %c0_i32_214 = arith.constant 0 : i32
    %c0_i32_215 = arith.constant 0 : i32
    %293 = tpu.memref_slice %arg2[%c0_i32_214, %c0_i32_215] : memref<512x128xf32, #tpu.memory_space<any>> -> memref<1x128xf32, #tpu.memory_space<any>>
    %c17_i32_216 = arith.constant 17 : i32
    %c0_i32_217 = arith.constant 0 : i32
    %294 = tpu.memref_slice %arg5[%c17_i32_216, %c0_i32_217] : memref<32x128xf32, #tpu.memory_space<vmem>> -> memref<1x128xf32, #tpu.memory_space<vmem>>
    %295 = tpu.memref_slice %arg6[%c17_i32_213] : memref<32x!tpu.dma_semaphore, #tpu.memory_space<semaphore_mem>> -> memref<1x!tpu.dma_semaphore, #tpu.memory_space<semaphore_mem>>
    %296 = tpu.memref_squeeze %295 : memref<1x!tpu.dma_semaphore, #tpu.memory_space<semaphore_mem>> -> memref<!tpu.dma_semaphore, #tpu.memory_space<semaphore_mem>>
    tpu.wait_dma2 semaphore(%296 : memref<!tpu.dma_semaphore, #tpu.memory_space<semaphore_mem>>) src(%293 : memref<1x128xf32, #tpu.memory_space<any>>) dst(%294 : memref<1x128xf32, #tpu.memory_space<vmem>>)
    %c18_i32_218 = arith.constant 18 : i32
    %c0_i32_219 = arith.constant 0 : i32
    %c0_i32_220 = arith.constant 0 : i32
    %297 = tpu.memref_slice %arg2[%c0_i32_219, %c0_i32_220] : memref<512x128xf32, #tpu.memory_space<any>> -> memref<1x128xf32, #tpu.memory_space<any>>
    %c18_i32_221 = arith.constant 18 : i32
    %c0_i32_222 = arith.constant 0 : i32
    %298 = tpu.memref_slice %arg5[%c18_i32_221, %c0_i32_222] : memref<32x128xf32, #tpu.memory_space<vmem>> -> memref<1x128xf32, #tpu.memory_space<vmem>>
    %299 = tpu.memref_slice %arg6[%c18_i32_218] : memref<32x!tpu.dma_semaphore, #tpu.memory_space<semaphore_mem>> -> memref<1x!tpu.dma_semaphore, #tpu.memory_space<semaphore_mem>>
    %300 = tpu.memref_squeeze %299 : memref<1x!tpu.dma_semaphore, #tpu.memory_space<semaphore_mem>> -> memref<!tpu.dma_semaphore, #tpu.memory_space<semaphore_mem>>
    tpu.wait_dma2 semaphore(%300 : memref<!tpu.dma_semaphore, #tpu.memory_space<semaphore_mem>>) src(%297 : memref<1x128xf32, #tpu.memory_space<any>>) dst(%298 : memref<1x128xf32, #tpu.memory_space<vmem>>)
    %c19_i32_223 = arith.constant 19 : i32
    %c0_i32_224 = arith.constant 0 : i32
    %c0_i32_225 = arith.constant 0 : i32
    %301 = tpu.memref_slice %arg2[%c0_i32_224, %c0_i32_225] : memref<512x128xf32, #tpu.memory_space<any>> -> memref<1x128xf32, #tpu.memory_space<any>>
    %c19_i32_226 = arith.constant 19 : i32
    %c0_i32_227 = arith.constant 0 : i32
    %302 = tpu.memref_slice %arg5[%c19_i32_226, %c0_i32_227] : memref<32x128xf32, #tpu.memory_space<vmem>> -> memref<1x128xf32, #tpu.memory_space<vmem>>
    %303 = tpu.memref_slice %arg6[%c19_i32_223] : memref<32x!tpu.dma_semaphore, #tpu.memory_space<semaphore_mem>> -> memref<1x!tpu.dma_semaphore, #tpu.memory_space<semaphore_mem>>
    %304 = tpu.memref_squeeze %303 : memref<1x!tpu.dma_semaphore, #tpu.memory_space<semaphore_mem>> -> memref<!tpu.dma_semaphore, #tpu.memory_space<semaphore_mem>>
    tpu.wait_dma2 semaphore(%304 : memref<!tpu.dma_semaphore, #tpu.memory_space<semaphore_mem>>) src(%301 : memref<1x128xf32, #tpu.memory_space<any>>) dst(%302 : memref<1x128xf32, #tpu.memory_space<vmem>>)
    %c20_i32_228 = arith.constant 20 : i32
    %c0_i32_229 = arith.constant 0 : i32
    %c0_i32_230 = arith.constant 0 : i32
    %305 = tpu.memref_slice %arg2[%c0_i32_229, %c0_i32_230] : memref<512x128xf32, #tpu.memory_space<any>> -> memref<1x128xf32, #tpu.memory_space<any>>
    %c20_i32_231 = arith.constant 20 : i32
    %c0_i32_232 = arith.constant 0 : i32
    %306 = tpu.memref_slice %arg5[%c20_i32_231, %c0_i32_232] : memref<32x128xf32, #tpu.memory_space<vmem>> -> memref<1x128xf32, #tpu.memory_space<vmem>>
    %307 = tpu.memref_slice %arg6[%c20_i32_228] : memref<32x!tpu.dma_semaphore, #tpu.memory_space<semaphore_mem>> -> memref<1x!tpu.dma_semaphore, #tpu.memory_space<semaphore_mem>>
    %308 = tpu.memref_squeeze %307 : memref<1x!tpu.dma_semaphore, #tpu.memory_space<semaphore_mem>> -> memref<!tpu.dma_semaphore, #tpu.memory_space<semaphore_mem>>
    tpu.wait_dma2 semaphore(%308 : memref<!tpu.dma_semaphore, #tpu.memory_space<semaphore_mem>>) src(%305 : memref<1x128xf32, #tpu.memory_space<any>>) dst(%306 : memref<1x128xf32, #tpu.memory_space<vmem>>)
    %c21_i32_233 = arith.constant 21 : i32
    %c0_i32_234 = arith.constant 0 : i32
    %c0_i32_235 = arith.constant 0 : i32
    %309 = tpu.memref_slice %arg2[%c0_i32_234, %c0_i32_235] : memref<512x128xf32, #tpu.memory_space<any>> -> memref<1x128xf32, #tpu.memory_space<any>>
    %c21_i32_236 = arith.constant 21 : i32
    %c0_i32_237 = arith.constant 0 : i32
    %310 = tpu.memref_slice %arg5[%c21_i32_236, %c0_i32_237] : memref<32x128xf32, #tpu.memory_space<vmem>> -> memref<1x128xf32, #tpu.memory_space<vmem>>
    %311 = tpu.memref_slice %arg6[%c21_i32_233] : memref<32x!tpu.dma_semaphore, #tpu.memory_space<semaphore_mem>> -> memref<1x!tpu.dma_semaphore, #tpu.memory_space<semaphore_mem>>
    %312 = tpu.memref_squeeze %311 : memref<1x!tpu.dma_semaphore, #tpu.memory_space<semaphore_mem>> -> memref<!tpu.dma_semaphore, #tpu.memory_space<semaphore_mem>>
    tpu.wait_dma2 semaphore(%312 : memref<!tpu.dma_semaphore, #tpu.memory_space<semaphore_mem>>) src(%309 : memref<1x128xf32, #tpu.memory_space<any>>) dst(%310 : memref<1x128xf32, #tpu.memory_space<vmem>>)
    %c22_i32_238 = arith.constant 22 : i32
    %c0_i32_239 = arith.constant 0 : i32
    %c0_i32_240 = arith.constant 0 : i32
    %313 = tpu.memref_slice %arg2[%c0_i32_239, %c0_i32_240] : memref<512x128xf32, #tpu.memory_space<any>> -> memref<1x128xf32, #tpu.memory_space<any>>
    %c22_i32_241 = arith.constant 22 : i32
    %c0_i32_242 = arith.constant 0 : i32
    %314 = tpu.memref_slice %arg5[%c22_i32_241, %c0_i32_242] : memref<32x128xf32, #tpu.memory_space<vmem>> -> memref<1x128xf32, #tpu.memory_space<vmem>>
    %315 = tpu.memref_slice %arg6[%c22_i32_238] : memref<32x!tpu.dma_semaphore, #tpu.memory_space<semaphore_mem>> -> memref<1x!tpu.dma_semaphore, #tpu.memory_space<semaphore_mem>>
    %316 = tpu.memref_squeeze %315 : memref<1x!tpu.dma_semaphore, #tpu.memory_space<semaphore_mem>> -> memref<!tpu.dma_semaphore, #tpu.memory_space<semaphore_mem>>
    tpu.wait_dma2 semaphore(%316 : memref<!tpu.dma_semaphore, #tpu.memory_space<semaphore_mem>>) src(%313 : memref<1x128xf32, #tpu.memory_space<any>>) dst(%314 : memref<1x128xf32, #tpu.memory_space<vmem>>)
    %c23_i32_243 = arith.constant 23 : i32
    %c0_i32_244 = arith.constant 0 : i32
    %c0_i32_245 = arith.constant 0 : i32
    %317 = tpu.memref_slice %arg2[%c0_i32_244, %c0_i32_245] : memref<512x128xf32, #tpu.memory_space<any>> -> memref<1x128xf32, #tpu.memory_space<any>>
    %c23_i32_246 = arith.constant 23 : i32
    %c0_i32_247 = arith.constant 0 : i32
    %318 = tpu.memref_slice %arg5[%c23_i32_246, %c0_i32_247] : memref<32x128xf32, #tpu.memory_space<vmem>> -> memref<1x128xf32, #tpu.memory_space<vmem>>
    %319 = tpu.memref_slice %arg6[%c23_i32_243] : memref<32x!tpu.dma_semaphore, #tpu.memory_space<semaphore_mem>> -> memref<1x!tpu.dma_semaphore, #tpu.memory_space<semaphore_mem>>
    %320 = tpu.memref_squeeze %319 : memref<1x!tpu.dma_semaphore, #tpu.memory_space<semaphore_mem>> -> memref<!tpu.dma_semaphore, #tpu.memory_space<semaphore_mem>>
    tpu.wait_dma2 semaphore(%320 : memref<!tpu.dma_semaphore, #tpu.memory_space<semaphore_mem>>) src(%317 : memref<1x128xf32, #tpu.memory_space<any>>) dst(%318 : memref<1x128xf32, #tpu.memory_space<vmem>>)
    %c24_i32_248 = arith.constant 24 : i32
    %c0_i32_249 = arith.constant 0 : i32
    %c0_i32_250 = arith.constant 0 : i32
    %321 = tpu.memref_slice %arg2[%c0_i32_249, %c0_i32_250] : memref<512x128xf32, #tpu.memory_space<any>> -> memref<1x128xf32, #tpu.memory_space<any>>
    %c24_i32_251 = arith.constant 24 : i32
    %c0_i32_252 = arith.constant 0 : i32
    %322 = tpu.memref_slice %arg5[%c24_i32_251, %c0_i32_252] : memref<32x128xf32, #tpu.memory_space<vmem>> -> memref<1x128xf32, #tpu.memory_space<vmem>>
    %323 = tpu.memref_slice %arg6[%c24_i32_248] : memref<32x!tpu.dma_semaphore, #tpu.memory_space<semaphore_mem>> -> memref<1x!tpu.dma_semaphore, #tpu.memory_space<semaphore_mem>>
    %324 = tpu.memref_squeeze %323 : memref<1x!tpu.dma_semaphore, #tpu.memory_space<semaphore_mem>> -> memref<!tpu.dma_semaphore, #tpu.memory_space<semaphore_mem>>
    tpu.wait_dma2 semaphore(%324 : memref<!tpu.dma_semaphore, #tpu.memory_space<semaphore_mem>>) src(%321 : memref<1x128xf32, #tpu.memory_space<any>>) dst(%322 : memref<1x128xf32, #tpu.memory_space<vmem>>)
    %c25_i32_253 = arith.constant 25 : i32
    %c0_i32_254 = arith.constant 0 : i32
    %c0_i32_255 = arith.constant 0 : i32
    %325 = tpu.memref_slice %arg2[%c0_i32_254, %c0_i32_255] : memref<512x128xf32, #tpu.memory_space<any>> -> memref<1x128xf32, #tpu.memory_space<any>>
    %c25_i32_256 = arith.constant 25 : i32
    %c0_i32_257 = arith.constant 0 : i32
    %326 = tpu.memref_slice %arg5[%c25_i32_256, %c0_i32_257] : memref<32x128xf32, #tpu.memory_space<vmem>> -> memref<1x128xf32, #tpu.memory_space<vmem>>
    %327 = tpu.memref_slice %arg6[%c25_i32_253] : memref<32x!tpu.dma_semaphore, #tpu.memory_space<semaphore_mem>> -> memref<1x!tpu.dma_semaphore, #tpu.memory_space<semaphore_mem>>
    %328 = tpu.memref_squeeze %327 : memref<1x!tpu.dma_semaphore, #tpu.memory_space<semaphore_mem>> -> memref<!tpu.dma_semaphore, #tpu.memory_space<semaphore_mem>>
    tpu.wait_dma2 semaphore(%328 : memref<!tpu.dma_semaphore, #tpu.memory_space<semaphore_mem>>) src(%325 : memref<1x128xf32, #tpu.memory_space<any>>) dst(%326 : memref<1x128xf32, #tpu.memory_space<vmem>>)
    %c26_i32_258 = arith.constant 26 : i32
    %c0_i32_259 = arith.constant 0 : i32
    %c0_i32_260 = arith.constant 0 : i32
    %329 = tpu.memref_slice %arg2[%c0_i32_259, %c0_i32_260] : memref<512x128xf32, #tpu.memory_space<any>> -> memref<1x128xf32, #tpu.memory_space<any>>
    %c26_i32_261 = arith.constant 26 : i32
    %c0_i32_262 = arith.constant 0 : i32
    %330 = tpu.memref_slice %arg5[%c26_i32_261, %c0_i32_262] : memref<32x128xf32, #tpu.memory_space<vmem>> -> memref<1x128xf32, #tpu.memory_space<vmem>>
    %331 = tpu.memref_slice %arg6[%c26_i32_258] : memref<32x!tpu.dma_semaphore, #tpu.memory_space<semaphore_mem>> -> memref<1x!tpu.dma_semaphore, #tpu.memory_space<semaphore_mem>>
    %332 = tpu.memref_squeeze %331 : memref<1x!tpu.dma_semaphore, #tpu.memory_space<semaphore_mem>> -> memref<!tpu.dma_semaphore, #tpu.memory_space<semaphore_mem>>
    tpu.wait_dma2 semaphore(%332 : memref<!tpu.dma_semaphore, #tpu.memory_space<semaphore_mem>>) src(%329 : memref<1x128xf32, #tpu.memory_space<any>>) dst(%330 : memref<1x128xf32, #tpu.memory_space<vmem>>)
    %c27_i32_263 = arith.constant 27 : i32
    %c0_i32_264 = arith.constant 0 : i32
    %c0_i32_265 = arith.constant 0 : i32
    %333 = tpu.memref_slice %arg2[%c0_i32_264, %c0_i32_265] : memref<512x128xf32, #tpu.memory_space<any>> -> memref<1x128xf32, #tpu.memory_space<any>>
    %c27_i32_266 = arith.constant 27 : i32
    %c0_i32_267 = arith.constant 0 : i32
    %334 = tpu.memref_slice %arg5[%c27_i32_266, %c0_i32_267] : memref<32x128xf32, #tpu.memory_space<vmem>> -> memref<1x128xf32, #tpu.memory_space<vmem>>
    %335 = tpu.memref_slice %arg6[%c27_i32_263] : memref<32x!tpu.dma_semaphore, #tpu.memory_space<semaphore_mem>> -> memref<1x!tpu.dma_semaphore, #tpu.memory_space<semaphore_mem>>
    %336 = tpu.memref_squeeze %335 : memref<1x!tpu.dma_semaphore, #tpu.memory_space<semaphore_mem>> -> memref<!tpu.dma_semaphore, #tpu.memory_space<semaphore_mem>>
    tpu.wait_dma2 semaphore(%336 : memref<!tpu.dma_semaphore, #tpu.memory_space<semaphore_mem>>) src(%333 : memref<1x128xf32, #tpu.memory_space<any>>) dst(%334 : memref<1x128xf32, #tpu.memory_space<vmem>>)
    %c28_i32_268 = arith.constant 28 : i32
    %c0_i32_269 = arith.constant 0 : i32
    %c0_i32_270 = arith.constant 0 : i32
    %337 = tpu.memref_slice %arg2[%c0_i32_269, %c0_i32_270] : memref<512x128xf32, #tpu.memory_space<any>> -> memref<1x128xf32, #tpu.memory_space<any>>
    %c28_i32_271 = arith.constant 28 : i32
    %c0_i32_272 = arith.constant 0 : i32
    %338 = tpu.memref_slice %arg5[%c28_i32_271, %c0_i32_272] : memref<32x128xf32, #tpu.memory_space<vmem>> -> memref<1x128xf32, #tpu.memory_space<vmem>>
    %339 = tpu.memref_slice %arg6[%c28_i32_268] : memref<32x!tpu.dma_semaphore, #tpu.memory_space<semaphore_mem>> -> memref<1x!tpu.dma_semaphore, #tpu.memory_space<semaphore_mem>>
    %340 = tpu.memref_squeeze %339 : memref<1x!tpu.dma_semaphore, #tpu.memory_space<semaphore_mem>> -> memref<!tpu.dma_semaphore, #tpu.memory_space<semaphore_mem>>
    tpu.wait_dma2 semaphore(%340 : memref<!tpu.dma_semaphore, #tpu.memory_space<semaphore_mem>>) src(%337 : memref<1x128xf32, #tpu.memory_space<any>>) dst(%338 : memref<1x128xf32, #tpu.memory_space<vmem>>)
    %c29_i32_273 = arith.constant 29 : i32
    %c0_i32_274 = arith.constant 0 : i32
    %c0_i32_275 = arith.constant 0 : i32
    %341 = tpu.memref_slice %arg2[%c0_i32_274, %c0_i32_275] : memref<512x128xf32, #tpu.memory_space<any>> -> memref<1x128xf32, #tpu.memory_space<any>>
    %c29_i32_276 = arith.constant 29 : i32
    %c0_i32_277 = arith.constant 0 : i32
    %342 = tpu.memref_slice %arg5[%c29_i32_276, %c0_i32_277] : memref<32x128xf32, #tpu.memory_space<vmem>> -> memref<1x128xf32, #tpu.memory_space<vmem>>
    %343 = tpu.memref_slice %arg6[%c29_i32_273] : memref<32x!tpu.dma_semaphore, #tpu.memory_space<semaphore_mem>> -> memref<1x!tpu.dma_semaphore, #tpu.memory_space<semaphore_mem>>
    %344 = tpu.memref_squeeze %343 : memref<1x!tpu.dma_semaphore, #tpu.memory_space<semaphore_mem>> -> memref<!tpu.dma_semaphore, #tpu.memory_space<semaphore_mem>>
    tpu.wait_dma2 semaphore(%344 : memref<!tpu.dma_semaphore, #tpu.memory_space<semaphore_mem>>) src(%341 : memref<1x128xf32, #tpu.memory_space<any>>) dst(%342 : memref<1x128xf32, #tpu.memory_space<vmem>>)
    %c30_i32_278 = arith.constant 30 : i32
    %c0_i32_279 = arith.constant 0 : i32
    %c0_i32_280 = arith.constant 0 : i32
    %345 = tpu.memref_slice %arg2[%c0_i32_279, %c0_i32_280] : memref<512x128xf32, #tpu.memory_space<any>> -> memref<1x128xf32, #tpu.memory_space<any>>
    %c30_i32_281 = arith.constant 30 : i32
    %c0_i32_282 = arith.constant 0 : i32
    %346 = tpu.memref_slice %arg5[%c30_i32_281, %c0_i32_282] : memref<32x128xf32, #tpu.memory_space<vmem>> -> memref<1x128xf32, #tpu.memory_space<vmem>>
    %347 = tpu.memref_slice %arg6[%c30_i32_278] : memref<32x!tpu.dma_semaphore, #tpu.memory_space<semaphore_mem>> -> memref<1x!tpu.dma_semaphore, #tpu.memory_space<semaphore_mem>>
    %348 = tpu.memref_squeeze %347 : memref<1x!tpu.dma_semaphore, #tpu.memory_space<semaphore_mem>> -> memref<!tpu.dma_semaphore, #tpu.memory_space<semaphore_mem>>
    tpu.wait_dma2 semaphore(%348 : memref<!tpu.dma_semaphore, #tpu.memory_space<semaphore_mem>>) src(%345 : memref<1x128xf32, #tpu.memory_space<any>>) dst(%346 : memref<1x128xf32, #tpu.memory_space<vmem>>)
    %c31_i32_283 = arith.constant 31 : i32
    %c0_i32_284 = arith.constant 0 : i32
    %c0_i32_285 = arith.constant 0 : i32
    %349 = tpu.memref_slice %arg2[%c0_i32_284, %c0_i32_285] : memref<512x128xf32, #tpu.memory_space<any>> -> memref<1x128xf32, #tpu.memory_space<any>>
    %c31_i32_286 = arith.constant 31 : i32
    %c0_i32_287 = arith.constant 0 : i32
    %350 = tpu.memref_slice %arg5[%c31_i32_286, %c0_i32_287] : memref<32x128xf32, #tpu.memory_space<vmem>> -> memref<1x128xf32, #tpu.memory_space<vmem>>
    %351 = tpu.memref_slice %arg6[%c31_i32_283] : memref<32x!tpu.dma_semaphore, #tpu.memory_space<semaphore_mem>> -> memref<1x!tpu.dma_semaphore, #tpu.memory_space<semaphore_mem>>
    %352 = tpu.memref_squeeze %351 : memref<1x!tpu.dma_semaphore, #tpu.memory_space<semaphore_mem>> -> memref<!tpu.dma_semaphore, #tpu.memory_space<semaphore_mem>>
    tpu.wait_dma2 semaphore(%352 : memref<!tpu.dma_semaphore, #tpu.memory_space<semaphore_mem>>) src(%349 : memref<1x128xf32, #tpu.memory_space<any>>) dst(%350 : memref<1x128xf32, #tpu.memory_space<vmem>>)
    %c0 = arith.constant 0 : index
    %c0_288 = arith.constant 0 : index
    %353 = vector.load %arg5[%c0, %c0_288] : memref<32x128xf32, #tpu.memory_space<vmem>>, vector<32x128xf32>
    %354 = vector.shape_cast %353 : vector<32x128xf32> to vector<4x8x128xf32>
    %c0_289 = arith.constant 0 : index
    %c0_290 = arith.constant 0 : index
    %355 = vector.load %arg3[%c0_289, %c0_290] : memref<8x128xf32, #tpu.memory_space<vmem>>, vector<8x128xf32>
    %356 = vector.shape_cast %355 : vector<8x128xf32> to vector<1x8x128xf32>
    %357 = vector.broadcast %356 : vector<1x8x128xf32> to vector<4x8x128xf32>
    %358 = arith.addf %354, %357 : vector<4x8x128xf32>
    %359 = vector.shape_cast %358 : vector<4x8x128xf32> to vector<32x128xf32>
    %c0_291 = arith.constant 0 : index
    %c0_292 = arith.constant 0 : index
    %360 = vector.load %arg4[%c0_291, %c0_292] : memref<32x128xf32, #tpu.memory_space<vmem>>, vector<32x128xf32>
    tpu.vector_store %arg4[%c0_291, %c0_292], %359 {strides = array<i32>} : memref<32x128xf32, #tpu.memory_space<vmem>>, vector<32x128xf32>,
    return
  }
  func.func @transform_1(%arg0: i32, %arg1: memref<64xi32, #tpu.memory_space<smem>>) -> (i32, i32) {
    %c0_i32 = arith.constant 0 : i32
    %c0_i32_0 = arith.constant 0 : i32
    %c0_i32_1 = arith.constant 0 : i32
    return %c0_i32, %c0_i32_0 : i32, i32
  }
  func.func @transform_2(%arg0: i32, %arg1: memref<64xi32, #tpu.memory_space<smem>>) -> (i32, i32) {
    %c0_i32 = arith.constant 0 : i32
    %c0_i32_0 = arith.constant 0 : i32
    return %arg0, %c0_i32 : i32, i32
  }
}

</mosaic_0001>

<llo_original>
// kernel: tpu_custom_call.1
$region0: #{tpu_custom_call.1}
  #allocation0 [shape = 'u32[]', space=smem, size = 0x4, offset = 0x4, fixed_abs, tag = 'smem constant byte address 0x4 - core index']
  #allocation1 [shape = 'u32[144,128]{1,0:T(1,128)}', space=vmem, size = 0x12000, scoped, tag = 'internal scratch']
  #allocation2 [shape = 'f32[32,128]{1,0:T(8,128)}', space=vmem, size = 0x4000, scoped, tag = 'scratch operand']
  #allocation3 [shape = 's32[32]{0}', space=sflag, size = 0x80, scoped, tag = 'scratch operand']
  #allocation4 [shape = 's32[1]{0}', space=sflag, size = 0x4, scoped, tag = 'scoped memory for tpu_custom_call.1']
  #allocation5 [shape = 'u8[512]{0}', space=smem, size = 0x200, scoped, tag = 'prefetched SMEM operand 0']
  #allocation10 [shape = 's32[]', space=sflag, size = 0x4, offset = 0, fixed_abs, tag = 'sflag constant byte address 0x0 - dummy sync flag']
  #allocation11 [shape = 's32[]', space=sflag, size = 0x4, offset = 0, fixed_abs, tag = 'sflag constant byte address 0x0 - dummy sync flag']
  #allocation12 [shape = 'u32[]', space=smem, size = 0x4, offset = 0x44, fixed_abs, tag = 'smem constant byte address 0x44 - assertion arg 0']
  #allocation13 [shape = 'u32[]', space=smem, size = 0x4, offset = 0x48, fixed_abs, tag = 'smem constant byte address 0x48 - assertion arg 1']
  #allocation14 [shape = 's32[]', space=sflag, size = 0x4, offset = 0, fixed_abs, tag = 'sflag constant byte address 0x0 - dummy sync flag']
  #allocation15 [shape = 's32[]', space=sflag, size = 0x4, offset = 0, fixed_abs, tag = 'sflag constant byte address 0x0 - dummy sync flag']
  #allocation16 [shape = 's32[]', space=sflag, size = 0x4, offset = 0, fixed_abs, tag = 'sflag constant byte address 0x0 - dummy sync flag']
  #allocation17 [shape = 's32[]', space=sflag, size = 0x4, offset = 0, fixed_abs, tag = 'sflag constant byte address 0x0 - dummy sync flag']
  #allocation18 [shape = 's32[]', space=sflag, size = 0x4, offset = 0, fixed_abs, tag = 'sflag constant byte address 0x0 - dummy sync flag']
  #allocation19 [shape = 's32[]', space=sflag, size = 0x4, offset = 0, fixed_abs, tag = 'sflag constant byte address 0x0 - dummy sync flag']
  #allocation20 [shape = 's32[]', space=sflag, size = 0x4, offset = 0, fixed_abs, tag = 'sflag constant byte address 0x0 - dummy sync flag']
  #allocation21 [shape = 's32[]', space=sflag, size = 0x4, offset = 0, fixed_abs, tag = 'sflag constant byte address 0x0 - dummy sync flag']
  #allocation22 [shape = 's32[]', space=sflag, size = 0x4, offset = 0, fixed_abs, tag = 'sflag constant byte address 0x0 - dummy sync flag']
  #allocation23 [shape = 's32[]', space=sflag, size = 0x4, offset = 0, fixed_abs, tag = 'sflag constant byte address 0x0 - dummy sync flag']
  #allocation24 [shape = 's32[]', space=sflag, size = 0x4, offset = 0, fixed_abs, tag = 'sflag constant byte address 0x0 - dummy sync flag']
  #allocation25 [shape = 's32[]', space=sflag, size = 0x4, offset = 0, fixed_abs, tag = 'sflag constant byte address 0x0 - dummy sync flag']
  #allocation26 [shape = 's32[]', space=sflag, size = 0x4, offset = 0, fixed_abs, tag = 'sflag constant byte address 0x0 - dummy sync flag']
  #allocation27 [shape = 's32[]', space=sflag, size = 0x4, offset = 0, fixed_abs, tag = 'sflag constant byte address 0x0 - dummy sync flag']
  #allocation28 [shape = 's32[]', space=sflag, size = 0x4, offset = 0, fixed_abs, tag = 'sflag constant byte address 0x0 - dummy sync flag']
  #allocation29 [shape = 's32[]', space=sflag, size = 0x4, offset = 0, fixed_abs, tag = 'sflag constant byte address 0x0 - dummy sync flag']
  #allocation30 [shape = 's32[]', space=sflag, size = 0x4, offset = 0, fixed_abs, tag = 'sflag constant byte address 0x0 - dummy sync flag']
  #allocation31 [shape = 's32[]', space=sflag, size = 0x4, offset = 0, fixed_abs, tag = 'sflag constant byte address 0x0 - dummy sync flag']
  #allocation32 [shape = 's32[]', space=sflag, size = 0x4, offset = 0, fixed_abs, tag = 'sflag constant byte address 0x0 - dummy sync flag']
  #allocation33 [shape = 's32[]', space=sflag, size = 0x4, offset = 0, fixed_abs, tag = 'sflag constant byte address 0x0 - dummy sync flag']
  #allocation34 [shape = 's32[]', space=sflag, size = 0x4, offset = 0, fixed_abs, tag = 'sflag constant byte address 0x0 - dummy sync flag']
  #allocation35 [shape = 's32[]', space=sflag, size = 0x4, offset = 0, fixed_abs, tag = 'sflag constant byte address 0x0 - dummy sync flag']
  #allocation36 [shape = 's32[]', space=sflag, size = 0x4, offset = 0, fixed_abs, tag = 'sflag constant byte address 0x0 - dummy sync flag']
  #allocation37 [shape = 's32[]', space=sflag, size = 0x4, offset = 0, fixed_abs, tag = 'sflag constant byte address 0x0 - dummy sync flag']
  #allocation38 [shape = 's32[]', space=sflag, size = 0x4, offset = 0, fixed_abs, tag = 'sflag constant byte address 0x0 - dummy sync flag']
  #allocation39 [shape = 's32[]', space=sflag, size = 0x4, offset = 0, fixed_abs, tag = 'sflag constant byte address 0x0 - dummy sync flag']
  #allocation40 [shape = 's32[]', space=sflag, size = 0x4, offset = 0, fixed_abs, tag = 'sflag constant byte address 0x0 - dummy sync flag']
  #allocation41 [shape = 's32[]', space=sflag, size = 0x4, offset = 0, fixed_abs, tag = 'sflag constant byte address 0x0 - dummy sync flag']
  #allocation42 [shape = 's32[]', space=sflag, size = 0x4, offset = 0, fixed_abs, tag = 'sflag constant byte address 0x0 - dummy sync flag']
  #allocation43 [shape = 's32[]', space=sflag, size = 0x4, offset = 0, fixed_abs, tag = 'sflag constant byte address 0x0 - dummy sync flag']
  #allocation44 [shape = 's32[]', space=sflag, size = 0x4, offset = 0, fixed_abs, tag = 'sflag constant byte address 0x0 - dummy sync flag']
  #allocation45 [shape = 's32[]', space=sflag, size = 0x4, offset = 0, fixed_abs, tag = 'sflag constant byte address 0x0 - dummy sync flag']
  #allocation46 [shape = 's32[]', space=sflag, size = 0x4, offset = 0, fixed_abs, tag = 'sflag constant byte address 0x0 - dummy sync flag']
  #allocation47 [shape = 's32[]', space=sflag, size = 0x4, offset = 0, fixed_abs, tag = 'sflag constant byte address 0x0 - dummy sync flag']
  #allocation48 [shape = 's32[]', space=sflag, size = 0x4, offset = 0, fixed_abs, tag = 'sflag constant byte address 0x0 - dummy sync flag']
  #allocation49 [shape = 's32[]', space=sflag, size = 0x4, offset = 0, fixed_abs, tag = 'sflag constant byte address 0x0 - dummy sync flag']
  #allocation50 [shape = 's32[]', space=sflag, size = 0x4, offset = 0, fixed_abs, tag = 'sflag constant byte address 0x0 - dummy sync flag']
  #allocation51 [shape = 's32[]', space=sflag, size = 0x4, offset = 0, fixed_abs, tag = 'sflag constant byte address 0x0 - dummy sync flag']
  #allocation52 [shape = 's32[]', space=sflag, size = 0x4, offset = 0, fixed_abs, tag = 'sflag constant byte address 0x0 - dummy sync flag']
  #allocation53 [shape = 's32[]', space=sflag, size = 0x4, offset = 0, fixed_abs, tag = 'sflag constant byte address 0x0 - dummy sync flag']
  #allocation54 [shape = 's32[]', space=sflag, size = 0x4, offset = 0, fixed_abs, tag = 'sflag constant byte address 0x0 - dummy sync flag']
  #allocation55 [shape = 's32[]', space=sflag, size = 0x4, offset = 0, fixed_abs, tag = 'sflag constant byte address 0x0 - dummy sync flag']
  #allocation56 [shape = 's32[]', space=sflag, size = 0x4, offset = 0, fixed_abs, tag = 'sflag constant byte address 0x0 - dummy sync flag']
  #allocation57 [shape = 's32[]', space=sflag, size = 0x4, offset = 0, fixed_abs, tag = 'sflag constant byte address 0x0 - dummy sync flag']
  #allocation58 [shape = 's32[]', space=sflag, size = 0x4, offset = 0, fixed_abs, tag = 'sflag constant byte address 0x0 - dummy sync flag']
  #allocation59 [shape = 's32[]', space=sflag, size = 0x4, offset = 0, fixed_abs, tag = 'sflag constant byte address 0x0 - dummy sync flag']
  #allocation60 [shape = 's32[]', space=sflag, size = 0x4, offset = 0, fixed_abs, tag = 'sflag constant byte address 0x0 - dummy sync flag']
  #allocation61 [shape = 's32[]', space=sflag, size = 0x4, offset = 0, fixed_abs, tag = 'sflag constant byte address 0x0 - dummy sync flag']
  #allocation62 [shape = 's32[]', space=sflag, size = 0x4, offset = 0, fixed_abs, tag = 'sflag constant byte address 0x0 - dummy sync flag']
  #allocation63 [shape = 's32[]', space=sflag, size = 0x4, offset = 0, fixed_abs, tag = 'sflag constant byte address 0x0 - dummy sync flag']
  #allocation64 [shape = 's32[]', space=sflag, size = 0x4, offset = 0, fixed_abs, tag = 'sflag constant byte address 0x0 - dummy sync flag']
  #allocation65 [shape = 's32[]', space=sflag, size = 0x4, offset = 0, fixed_abs, tag = 'sflag constant byte address 0x0 - dummy sync flag']
  #allocation66 [shape = 's32[]', space=sflag, size = 0x4, offset = 0, fixed_abs, tag = 'sflag constant byte address 0x0 - dummy sync flag']
  #allocation67 [shape = 's32[]', space=sflag, size = 0x4, offset = 0, fixed_abs, tag = 'sflag constant byte address 0x0 - dummy sync flag']
  #allocation68 [shape = 's32[]', space=sflag, size = 0x4, offset = 0, fixed_abs, tag = 'sflag constant byte address 0x0 - dummy sync flag']
  #allocation69 [shape = 's32[]', space=sflag, size = 0x4, offset = 0, fixed_abs, tag = 'sflag constant byte address 0x0 - dummy sync flag']
  #allocation70 [shape = 's32[]', space=sflag, size = 0x4, offset = 0, fixed_abs, tag = 'sflag constant byte address 0x0 - dummy sync flag']
  #allocation71 [shape = 's32[]', space=sflag, size = 0x4, offset = 0, fixed_abs, tag = 'sflag constant byte address 0x0 - dummy sync flag']
  #allocation72 [shape = 's32[]', space=sflag, size = 0x4, offset = 0, fixed_abs, tag = 'sflag constant byte address 0x0 - dummy sync flag']
  #allocation73 [shape = 's32[]', space=sflag, size = 0x4, offset = 0, fixed_abs, tag = 'sflag constant byte address 0x0 - dummy sync flag']
  #allocation74 [shape = 's32[]', space=sflag, size = 0x4, offset = 0, fixed_abs, tag = 'sflag constant byte address 0x0 - dummy sync flag']
  #allocation75 [shape = 's32[]', space=sflag, size = 0x4, offset = 0, fixed_abs, tag = 'sflag constant byte address 0x0 - dummy sync flag']
  %s0 = inlined_call_operand.hbm [shape: s32[64], index: 0, kind: input, shape index: {}]
  %s1 = inlined_call_operand.hbm [shape: f32[512,128], index: 1, kind: input, shape index: {}]
  %s2 = inlined_call_operand.hbm [shape: f32[8,128], index: 2, kind: input, shape index: {}]
  %s3 = inlined_call_operand.hbm [shape: f32[64,128], index: 3, kind: output, shape index: {}]
  %s4 = sld [smem:[#allocation0]]
  $region169: #{tpu_custom_call.1} parent=0
    _
  %s6 = ssub.s32 1, %s4
  %s7 = scalar_select 0, %s6, %s4
  %9 = dma.hbm_to_smem %s0, 16, [#allocation5], [#allocation4]
  %10 = dma.done [#allocation4], 16
  %11 = sfence
  $region1: #{tpu_custom_call.1} parent=0
    #allocation6 [shape = 'u8[4096]{0}', space=vmem, size = 0x1000, scoped, tag = 'input window, operand 2, single buffered']
    #allocation7 [shape = 's32[2]{0}', space=sflag, size = 0x8, scoped, tag = 'scoped memory for tpu_custom_call.1']
    #allocation8 [shape = 's32[2]{0}', space=sflag, size = 0x8, scoped, tag = 'scoped memory for tpu_custom_call.1']
    #allocation9 [shape = 'u8[32768]{0}', space=vmem, size = 0x8000, scoped, tag = 'output window, operand 0']
    %12 = vsyncpa [#allocation7], 0
    %13 = vsyncpa [#allocation8], 0
    %s14 = scalar_lea.sflag [#allocation8], 1
    %15 = vsyncpa %s14, 0
    loop: start=0, step=1, limit=4
    $region2: #{tpu_custom_call.1} parent=1 // loop_pre_header
      _
    $region3: #{tpu_custom_call.1} parent=1 // loop_header
      %s17 = sphi 0, %s21
      %p18 = scmp.ge.s32.totalorder %s17, 4
      %s25 = sphi 0, %s25
      %s27 = sphi 0, %s25
      %s28 = sphi 0, %s27
      %s42 = sphi 0, %s28
      %s48 = sphi 0, %s50
      %s51 = sphi 0, %s48
      %s52 = sphi 0, %s51
      %s68 = sphi 0, %s52
    $region4: #{tpu_custom_call.1} parent=1 // loop_header_branch
      %20 = sbr.rel (%p18) target = $region8
    $region5: #{tpu_custom_call.1} parent=1 // loop_body
      %s22 = ssub.s32 %s17, 1
      %s23 = ssub.s32 %s17, 2
      %s24 = sadd.s32 %s17, 1
      %s26 = sadd.s32 %s25, 1
      %p29 = scmp.eq.s32.totalorder %s17, 1
      %p30 = scmp.ne.s32.totalorder %s25, %s27
      %p31 = scmp.eq.s32.totalorder %s17, 0
      %p32 = por %p30, %p31
      %p33 = scmp.ne.s32.totalorder %s25, %s27
      %p34 = scmp.eq.s32.totalorder %s22, 1
      %p35 = por %p33, %p34
      %p36 = scmp.ne.s32.totalorder %s27, %s28
      %p37 = scmp.eq.s32.totalorder %s22, 0
      %p38 = por %p36, %p37
      %p39 = scmp.ne.s32.totalorder %s27, %s28
      %p40 = scmp.eq.s32.totalorder %s23, 1
      %p41 = por %p39, %p40
      %p43 = scmp.ne.s32.totalorder %s28, %s42
      %p44 = scmp.eq.s32.totalorder %s23, 0
      %p45 = por %p43, %p44
      %s46 = ssub.s32 %s17, %s24
      %p47 = scmp.eq.s32.totalorder %s46, 0
      %s49 = sadd.s32 %s48, 1
      %s50 = scalar_select %p47, %s48, %s49
      %p53 = pneg %p47
      %p54 = scmp.eq.s32.totalorder %s17, 1
      %p55 = por %p53, %p54
      %p56 = scmp.ne.s32.totalorder %s48, %s51
      %p57 = scmp.eq.s32.totalorder %s17, 0
      %p58 = por %p56, %p57
      %p59 = scmp.ne.s32.totalorder %s48, %s51
      %p60 = scmp.eq.s32.totalorder %s22, 1
      %p61 = por %p59, %p60
      %p62 = scmp.ne.s32.totalorder %s51, %s52
      %p63 = scmp.eq.s32.totalorder %s22, 0
      %p64 = por %p62, %p63
      %p65 = scmp.ne.s32.totalorder %s51, %s52
      %p66 = scmp.eq.s32.totalorder %s23, 1
      %p67 = por %p65, %p66
      %p69 = scmp.ne.s32.totalorder %s52, %s68
      %p70 = scmp.eq.s32.totalorder %s23, 0
      %p71 = por %p69, %p70
      %p72 = scmp.le.s32.totalorder 1, %s17
      %p73 = scmp.lt.s32.totalorder %s17, 3
      %p74 = pnand %p72, %p73
      %p75 = pneg %p74
      // Predicated region
      $region9: #{tpu_custom_call.1} parent=5 // pred_check
        _
      $region10: #{tpu_custom_call.1} parent=5 // pred_check_branch
        %77 = sbr.rel (%p74) target = $region12
      $region11: #{tpu_custom_call.1} parent=5 // pred_region
        %s78 = ssub.s32 %s17, 1
        // Predicated region
        $region13: #{tpu_custom_call.1} parent=11 // pred_check
          %p79 = pneg %p38
        $region14: #{tpu_custom_call.1} parent=11 // pred_check_branch
          %81 = sbr.rel (%p79) target = $region16
        $region15: #{tpu_custom_call.1} parent=11 // pred_region
          %s83 = ssub.s32 128, 128
          %84 = vsyncadd [#allocation7], %s83
          %s86 = sshll.u32 [#allocation6], 4
          %s87 = int_to_ptr.vmem [resolvable:$true] %s86
          %89 = dma.hbm_to_vmem [thread:$0]  %s2, 128, %s87, [#allocation7]
        $region16: #{tpu_custom_call.1} parent=11 // pred_fallthru
          _
      $region12: #{tpu_custom_call.1} parent=5 // pred_fallthru
        _
      %p90 = scmp.lt.s32.totalorder %s17, 2
      // Predicated region
      $region17: #{tpu_custom_call.1} parent=5 // pred_check
        %p91 = pneg %p90
      $region18: #{tpu_custom_call.1} parent=5 // pred_check_branch
        %93 = sbr.rel (%p91) target = $region20
      $region19: #{tpu_custom_call.1} parent=5 // pred_region
        _
      $region20: #{tpu_custom_call.1} parent=5 // pred_fallthru
        _
      %p94 = scmp.le.s32.totalorder 1, %s17
      %p95 = scmp.lt.s32.totalorder %s17, 3
      %p96 = pnand %p94, %p95
      %p97 = pneg %p96
      // Predicated region
      $region21: #{tpu_custom_call.1} parent=5 // pred_check
        _
      $region22: #{tpu_custom_call.1} parent=5 // pred_check_branch
        %99 = sbr.rel (%p96) target = $region24
      $region23: #{tpu_custom_call.1} parent=5 // pred_region
        %s100 = ssub.s32 %s17, 1
        // Predicated region
        $region25: #{tpu_custom_call.1} parent=23 // pred_check
          %p101 = pneg %p38
        $region26: #{tpu_custom_call.1} parent=23 // pred_check_branch
          %103 = sbr.rel (%p101) target = $region28
        $region27: #{tpu_custom_call.1} parent=23 // pred_region
          %104 = dma.done [#allocation7], 128
        $region28: #{tpu_custom_call.1} parent=23 // pred_fallthru
          _
        %p105 = pneg %p38
        %p106 = pneg %p35
        %p107 = pneg %p64
        %p108 = pneg %p61
        %s109 = sand.u32 %s51, 1
        %s110 = scalar_lea.sflag [#allocation8], %s109
        %s111 = sand.u32 %s51, 1
        %s112 = smul.addr %s111, 32
        %s113 = scalar_lea.vmem [#allocation9], %s112
        %s114 = smul.u32 4, %s22
        %s115 = smul.u32 %s22, 32
        %s116 = sld [smem:[#allocation5 + %s115]]
        %s117 = smul.addr %s116, 16
        %s118 = scalar_lea.hbm %s1, %s117
        // Predicated region
        $region29: #{tpu_custom_call.1} parent=23 // pred_check
          _
        $region30: #{tpu_custom_call.1} parent=23 // pred_check_branch
          %120 = sbr.rel target = $region32
        $region31: #{tpu_custom_call.1} parent=23 // pred_region
          %121 = sst [smem:[#allocation12]] [#allocation11]
          %122 = sst [smem:[#allocation13]] [#allocation10]
        $region32: #{tpu_custom_call.1} parent=23 // pred_fallthru
          _
        %124 = shalt.err (0)
        %s126 = sshll.u32 [#allocation2], 4
        %s127 = int_to_ptr.vmem [resolvable:$true] %s126
        %129 = dma.hbm_to_vmem [thread:$0]  %s118, 16, %s127, [#allocation3]
        %s130 = sadd.s32 %s115, 1
        %s131 = sld [smem:[#allocation5 + %s130]]
        %s132 = smul.addr %s131, 16
        %s133 = scalar_lea.hbm %s1, %s132
        %s134 = scalar_lea.vmem [#allocation2], 1
        %s135 = scalar_lea.sflag [#allocation3], 1
        // Predicated region
        $region33: #{tpu_custom_call.1} parent=23 // pred_check
          _
        $region34: #{tpu_custom_call.1} parent=23 // pred_check_branch
          %137 = sbr.rel target = $region36
        $region35: #{tpu_custom_call.1} parent=23 // pred_region
          %138 = sst [smem:[#allocation12]] [#allocation15]
          %139 = sst [smem:[#allocation13]] [#allocation14]
        $region36: #{tpu_custom_call.1} parent=23 // pred_fallthru
          _
        %141 = shalt.err (0)
        %s143 = sshll.u32 %s134, 4
        %s144 = int_to_ptr.vmem [resolvable:$true] %s143
        %146 = dma.hbm_to_vmem [thread:$0]  %s133, 16, %s144, %s135
        %s147 = sadd.s32 %s115, 2
        %s148 = sld [smem:[#allocation5 + %s147]]
        %s149 = smul.addr %s148, 16
        %s150 = scalar_lea.hbm %s1, %s149
        %s151 = scalar_lea.vmem [#allocation2], 2
        %s152 = scalar_lea.sflag [#allocation3], 2
        // Predicated region
        $region37: #{tpu_custom_call.1} parent=23 // pred_check
          _
        $region38: #{tpu_custom_call.1} parent=23 // pred_check_branch
          %154 = sbr.rel target = $region40
        $region39: #{tpu_custom_call.1} parent=23 // pred_region
          %155 = sst [smem:[#allocation12]] [#allocation17]
          %156 = sst [smem:[#allocation13]] [#allocation16]
        $region40: #{tpu_custom_call.1} parent=23 // pred_fallthru
          _
        %158 = shalt.err (0)
        %s160 = sshll.u32 %s151, 4
        %s161 = int_to_ptr.vmem [resolvable:$true] %s160
        %163 = dma.hbm_to_vmem [thread:$0]  %s150, 16, %s161, %s152
        %s164 = sadd.s32 %s115, 3
        %s165 = sld [smem:[#allocation5 + %s164]]
        %s166 = smul.addr %s165, 16
        %s167 = scalar_lea.hbm %s1, %s166
        %s168 = scalar_lea.vmem [#allocation2], 3
        %s169 = scalar_lea.sflag [#allocation3], 3
        // Predicated region
        $region41: #{tpu_custom_call.1} parent=23 // pred_check
          _
        $region42: #{tpu_custom_call.1} parent=23 // pred_check_branch
          %171 = sbr.rel target = $region44
        $region43: #{tpu_custom_call.1} parent=23 // pred_region
          %172 = sst [smem:[#allocation12]] [#allocation19]
          %173 = sst [smem:[#allocation13]] [#allocation18]
        $region44: #{tpu_custom_call.1} parent=23 // pred_fallthru
          _
        %175 = shalt.err (0)
        %s177 = sshll.u32 %s168, 4
        %s178 = int_to_ptr.vmem [resolvable:$true] %s177
        %180 = dma.hbm_to_vmem [thread:$0]  %s167, 16, %s178, %s169
        %s181 = sadd.s32 %s115, 4
        %s182 = sld [smem:[#allocation5 + %s181]]
        %s183 = smul.addr %s182, 16
        %s184 = scalar_lea.hbm %s1, %s183
        %s185 = scalar_lea.vmem [#allocation2], 4
        %s186 = scalar_lea.sflag [#allocation3], 4
        // Predicated region
        $region45: #{tpu_custom_call.1} parent=23 // pred_check
          _
        $region46: #{tpu_custom_call.1} parent=23 // pred_check_branch
          %188 = sbr.rel target = $region48
        $region47: #{tpu_custom_call.1} parent=23 // pred_region
          %189 = sst [smem:[#allocation12]] [#allocation21]
          %190 = sst [smem:[#allocation13]] [#allocation20]
        $region48: #{tpu_custom_call.1} parent=23 // pred_fallthru
          _
        %192 = shalt.err (0)
        %s194 = sshll.u32 %s185, 4
        %s195 = int_to_ptr.vmem [resolvable:$true] %s194
        %197 = dma.hbm_to_vmem [thread:$0]  %s184, 16, %s195, %s186
        %s198 = sadd.s32 %s115, 5
        %s199 = sld [smem:[#allocation5 + %s198]]
        %s200 = smul.addr %s199, 16
        %s201 = scalar_lea.hbm %s1, %s200
        %s202 = scalar_lea.vmem [#allocation2], 5
        %s203 = scalar_lea.sflag [#allocation3], 5
        // Predicated region
        $region49: #{tpu_custom_call.1} parent=23 // pred_check
          _
        $region50: #{tpu_custom_call.1} parent=23 // pred_check_branch
          %205 = sbr.rel target = $region52
        $region51: #{tpu_custom_call.1} parent=23 // pred_region
          %206 = sst [smem:[#allocation12]] [#allocation23]
          %207 = sst [smem:[#allocation13]] [#allocation22]
        $region52: #{tpu_custom_call.1} parent=23 // pred_fallthru
          _
        %209 = shalt.err (0)
        %s211 = sshll.u32 %s202, 4
        %s212 = int_to_ptr.vmem [resolvable:$true] %s211
        %214 = dma.hbm_to_vmem [thread:$0]  %s201, 16, %s212, %s203
        %s215 = sadd.s32 %s115, 6
        %s216 = sld [smem:[#allocation5 + %s215]]
        %s217 = smul.addr %s216, 16
        %s218 = scalar_lea.hbm %s1, %s217
        %s219 = scalar_lea.vmem [#allocation2], 6
        %s220 = scalar_lea.sflag [#allocation3], 6
        // Predicated region
        $region53: #{tpu_custom_call.1} parent=23 // pred_check
          _
        $region54: #{tpu_custom_call.1} parent=23 // pred_check_branch
          %222 = sbr.rel target = $region56
        $region55: #{tpu_custom_call.1} parent=23 // pred_region
          %223 = sst [smem:[#allocation12]] [#allocation25]
          %224 = sst [smem:[#allocation13]] [#allocation24]
        $region56: #{tpu_custom_call.1} parent=23 // pred_fallthru
          _
        %226 = shalt.err (0)
        %s228 = sshll.u32 %s219, 4
        %s229 = int_to_ptr.vmem [resolvable:$true] %s228
        %231 = dma.hbm_to_vmem [thread:$0]  %s218, 16, %s229, %s220
        %s232 = sadd.s32 %s115, 7
        %s233 = sld [smem:[#allocation5 + %s232]]
        %s234 = smul.addr %s233, 16
        %s235 = scalar_lea.hbm %s1, %s234
        %s236 = scalar_lea.vmem [#allocation2], 7
        %s237 = scalar_lea.sflag [#allocation3], 7
        // Predicated region
        $region57: #{tpu_custom_call.1} parent=23 // pred_check
          _
        $region58: #{tpu_custom_call.1} parent=23 // pred_check_branch
          %239 = sbr.rel target = $region60
        $region59: #{tpu_custom_call.1} parent=23 // pred_region
          %240 = sst [smem:[#allocation12]] [#allocation27]
          %241 = sst [smem:[#allocation13]] [#allocation26]
        $region60: #{tpu_custom_call.1} parent=23 // pred_fallthru
          _
        %243 = shalt.err (0)
        %s245 = sshll.u32 %s236, 4
        %s246 = int_to_ptr.vmem [resolvable:$true] %s245
        %248 = dma.hbm_to_vmem [thread:$0]  %s235, 16, %s246, %s237
        %s249 = sadd.s32 %s115, 8
        %s250 = sld [smem:[#allocation5 + %s249]]
        %s251 = smul.addr %s250, 16
        %s252 = scalar_lea.hbm %s1, %s251
        %s253 = scalar_lea.vmem [#allocation2], 8
        %s254 = scalar_lea.sflag [#allocation3], 8
        // Predicated region
        $region61: #{tpu_custom_call.1} parent=23 // pred_check
          _
        $region62: #{tpu_custom_call.1} parent=23 // pred_check_branch
          %256 = sbr.rel target = $region64
        $region63: #{tpu_custom_call.1} parent=23 // pred_region
          %257 = sst [smem:[#allocation12]] [#allocation29]
          %258 = sst [smem:[#allocation13]] [#allocation28]
        $region64: #{tpu_custom_call.1} parent=23 // pred_fallthru
          _
        %260 = shalt.err (0)
        %s262 = sshll.u32 %s253, 4
        %s263 = int_to_ptr.vmem [resolvable:$true] %s262
        %265 = dma.hbm_to_vmem [thread:$0]  %s252, 16, %s263, %s254
        %s266 = sadd.s32 %s115, 9
        %s267 = sld [smem:[#allocation5 + %s266]]
        %s268 = smul.addr %s267, 16
        %s269 = scalar_lea.hbm %s1, %s268
        %s270 = scalar_lea.vmem [#allocation2], 9
        %s271 = scalar_lea.sflag [#allocation3], 9
        // Predicated region
        $region65: #{tpu_custom_call.1} parent=23 // pred_check
          _
        $region66: #{tpu_custom_call.1} parent=23 // pred_check_branch
          %273 = sbr.rel target = $region68
        $region67: #{tpu_custom_call.1} parent=23 // pred_region
          %274 = sst [smem:[#allocation12]] [#allocation31]
          %275 = sst [smem:[#allocation13]] [#allocation30]
        $region68: #{tpu_custom_call.1} parent=23 // pred_fallthru
          _
        %277 = shalt.err (0)
        %s279 = sshll.u32 %s270, 4
        %s280 = int_to_ptr.vmem [resolvable:$true] %s279
        %282 = dma.hbm_to_vmem [thread:$0]  %s269, 16, %s280, %s271
        %s283 = sadd.s32 %s115, 10
        %s284 = sld [smem:[#allocation5 + %s283]]
        %s285 = smul.addr %s284, 16
        %s286 = scalar_lea.hbm %s1, %s285
        %s287 = scalar_lea.vmem [#allocation2], 10
        %s288 = scalar_lea.sflag [#allocation3], 10
        // Predicated region
        $region69: #{tpu_custom_call.1} parent=23 // pred_check
          _
        $region70: #{tpu_custom_call.1} parent=23 // pred_check_branch
          %290 = sbr.rel target = $region72
        $region71: #{tpu_custom_call.1} parent=23 // pred_region
          %291 = sst [smem:[#allocation12]] [#allocation33]
          %292 = sst [smem:[#allocation13]] [#allocation32]
        $region72: #{tpu_custom_call.1} parent=23 // pred_fallthru
          _
        %294 = shalt.err (0)
        %s296 = sshll.u32 %s287, 4
        %s297 = int_to_ptr.vmem [resolvable:$true] %s296
        %299 = dma.hbm_to_vmem [thread:$0]  %s286, 16, %s297, %s288
        %s300 = sadd.s32 %s115, 11
        %s301 = sld [smem:[#allocation5 + %s300]]
        %s302 = smul.addr %s301, 16
        %s303 = scalar_lea.hbm %s1, %s302
        %s304 = scalar_lea.vmem [#allocation2], 11
        %s305 = scalar_lea.sflag [#allocation3], 11
        // Predicated region
        $region73: #{tpu_custom_call.1} parent=23 // pred_check
          _
        $region74: #{tpu_custom_call.1} parent=23 // pred_check_branch
          %307 = sbr.rel target = $region76
        $region75: #{tpu_custom_call.1} parent=23 // pred_region
          %308 = sst [smem:[#allocation12]] [#allocation35]
          %309 = sst [smem:[#allocation13]] [#allocation34]
        $region76: #{tpu_custom_call.1} parent=23 // pred_fallthru
          _
        %311 = shalt.err (0)
        %s313 = sshll.u32 %s304, 4
        %s314 = int_to_ptr.vmem [resolvable:$true] %s313
        %316 = dma.hbm_to_vmem [thread:$0]  %s303, 16, %s314, %s305
        %s317 = sadd.s32 %s115, 12
        %s318 = sld [smem:[#allocation5 + %s317]]
        %s319 = smul.addr %s318, 16
        %s320 = scalar_lea.hbm %s1, %s319
        %s321 = scalar_lea.vmem [#allocation2], 12
        %s322 = scalar_lea.sflag [#allocation3], 12
        // Predicated region
        $region77: #{tpu_custom_call.1} parent=23 // pred_check
          _
        $region78: #{tpu_custom_call.1} parent=23 // pred_check_branch
          %324 = sbr.rel target = $region80
        $region79: #{tpu_custom_call.1} parent=23 // pred_region
          %325 = sst [smem:[#allocation12]] [#allocation37]
          %326 = sst [smem:[#allocation13]] [#allocation36]
        $region80: #{tpu_custom_call.1} parent=23 // pred_fallthru
          _
        %328 = shalt.err (0)
        %s330 = sshll.u32 %s321, 4
        %s331 = int_to_ptr.vmem [resolvable:$true] %s330
        %333 = dma.hbm_to_vmem [thread:$0]  %s320, 16, %s331, %s322
        %s334 = sadd.s32 %s115, 13
        %s335 = sld [smem:[#allocation5 + %s334]]
        %s336 = smul.addr %s335, 16
        %s337 = scalar_lea.hbm %s1, %s336
        %s338 = scalar_lea.vmem [#allocation2], 13
        %s339 = scalar_lea.sflag [#allocation3], 13
        // Predicated region
        $region81: #{tpu_custom_call.1} parent=23 // pred_check
          _
        $region82: #{tpu_custom_call.1} parent=23 // pred_check_branch
          %341 = sbr.rel target = $region84
        $region83: #{tpu_custom_call.1} parent=23 // pred_region
          %342 = sst [smem:[#allocation12]] [#allocation39]
          %343 = sst [smem:[#allocation13]] [#allocation38]
        $region84: #{tpu_custom_call.1} parent=23 // pred_fallthru
          _
        %345 = shalt.err (0)
        %s347 = sshll.u32 %s338, 4
        %s348 = int_to_ptr.vmem [resolvable:$true] %s347
        %350 = dma.hbm_to_vmem [thread:$0]  %s337, 16, %s348, %s339
        %s351 = sadd.s32 %s115, 14
        %s352 = sld [smem:[#allocation5 + %s351]]
        %s353 = smul.addr %s352, 16
        %s354 = scalar_lea.hbm %s1, %s353
        %s355 = scalar_lea.vmem [#allocation2], 14
        %s356 = scalar_lea.sflag [#allocation3], 14
        // Predicated region
        $region85: #{tpu_custom_call.1} parent=23 // pred_check
          _
        $region86: #{tpu_custom_call.1} parent=23 // pred_check_branch
          %358 = sbr.rel target = $region88
        $region87: #{tpu_custom_call.1} parent=23 // pred_region
          %359 = sst [smem:[#allocation12]] [#allocation41]
          %360 = sst [smem:[#allocation13]] [#allocation40]
        $region88: #{tpu_custom_call.1} parent=23 // pred_fallthru
          _
        %362 = shalt.err (0)
        %s364 = sshll.u32 %s355, 4
        %s365 = int_to_ptr.vmem [resolvable:$true] %s364
        %367 = dma.hbm_to_vmem [thread:$0]  %s354, 16, %s365, %s356
        %s368 = sadd.s32 %s115, 15
        %s369 = sld [smem:[#allocation5 + %s368]]
        %s370 = smul.addr %s369, 16
        %s371 = scalar_lea.hbm %s1, %s370
        %s372 = scalar_lea.vmem [#allocation2], 15
        %s373 = scalar_lea.sflag [#allocation3], 15
        // Predicated region
        $region89: #{tpu_custom_call.1} parent=23 // pred_check
          _
        $region90: #{tpu_custom_call.1} parent=23 // pred_check_branch
          %375 = sbr.rel target = $region92
        $region91: #{tpu_custom_call.1} parent=23 // pred_region
          %376 = sst [smem:[#allocation12]] [#allocation43]
          %377 = sst [smem:[#allocation13]] [#allocation42]
        $region92: #{tpu_custom_call.1} parent=23 // pred_fallthru
          _
        %379 = shalt.err (0)
        %s381 = sshll.u32 %s372, 4
        %s382 = int_to_ptr.vmem [resolvable:$true] %s381
        %384 = dma.hbm_to_vmem [thread:$0]  %s371, 16, %s382, %s373
        %s385 = sadd.s32 %s115, 16
        %s386 = sld [smem:[#allocation5 + %s385]]
        %s387 = smul.addr %s386, 16
        %s388 = scalar_lea.hbm %s1, %s387
        %s389 = scalar_lea.vmem [#allocation2], 16
        %s390 = scalar_lea.sflag [#allocation3], 16
        // Predicated region
        $region93: #{tpu_custom_call.1} parent=23 // pred_check
          _
        $region94: #{tpu_custom_call.1} parent=23 // pred_check_branch
          %392 = sbr.rel target = $region96
        $region95: #{tpu_custom_call.1} parent=23 // pred_region
          %393 = sst [smem:[#allocation12]] [#allocation45]
          %394 = sst [smem:[#allocation13]] [#allocation44]
        $region96: #{tpu_custom_call.1} parent=23 // pred_fallthru
          _
        %396 = shalt.err (0)
        %s398 = sshll.u32 %s389, 4
        %s399 = int_to_ptr.vmem [resolvable:$true] %s398
        %401 = dma.hbm_to_vmem [thread:$0]  %s388, 16, %s399, %s390
        %s402 = sadd.s32 %s115, 17
        %s403 = sld [smem:[#allocation5 + %s402]]
        %s404 = smul.addr %s403, 16
        %s405 = scalar_lea.hbm %s1, %s404
        %s406 = scalar_lea.vmem [#allocation2], 17
        %s407 = scalar_lea.sflag [#allocation3], 17
        // Predicated region
        $region97: #{tpu_custom_call.1} parent=23 // pred_check
          _
        $region98: #{tpu_custom_call.1} parent=23 // pred_check_branch
          %409 = sbr.rel target = $region100
        $region99: #{tpu_custom_call.1} parent=23 // pred_region
          %410 = sst [smem:[#allocation12]] [#allocation47]
          %411 = sst [smem:[#allocation13]] [#allocation46]
        $region100: #{tpu_custom_call.1} parent=23 // pred_fallthru
          _
        %413 = shalt.err (0)
        %s415 = sshll.u32 %s406, 4
        %s416 = int_to_ptr.vmem [resolvable:$true] %s415
        %418 = dma.hbm_to_vmem [thread:$0]  %s405, 16, %s416, %s407
        %s419 = sadd.s32 %s115, 18
        %s420 = sld [smem:[#allocation5 + %s419]]
        %s421 = smul.addr %s420, 16
        %s422 = scalar_lea.hbm %s1, %s421
        %s423 = scalar_lea.vmem [#allocation2], 18
        %s424 = scalar_lea.sflag [#allocation3], 18
        // Predicated region
        $region101: #{tpu_custom_call.1} parent=23 // pred_check
          _
        $region102: #{tpu_custom_call.1} parent=23 // pred_check_branch
          %426 = sbr.rel target = $region104
        $region103: #{tpu_custom_call.1} parent=23 // pred_region
          %427 = sst [smem:[#allocation12]] [#allocation49]
          %428 = sst [smem:[#allocation13]] [#allocation48]
        $region104: #{tpu_custom_call.1} parent=23 // pred_fallthru
          _
        %430 = shalt.err (0)
        %s432 = sshll.u32 %s423, 4
        %s433 = int_to_ptr.vmem [resolvable:$true] %s432
        %435 = dma.hbm_to_vmem [thread:$0]  %s422, 16, %s433, %s424
        %s436 = sadd.s32 %s115, 19
        %s437 = sld [smem:[#allocation5 + %s436]]
        %s438 = smul.addr %s437, 16
        %s439 = scalar_lea.hbm %s1, %s438
        %s440 = scalar_lea.vmem [#allocation2], 19
        %s441 = scalar_lea.sflag [#allocation3], 19
        // Predicated region
        $region105: #{tpu_custom_call.1} parent=23 // pred_check
          _
        $region106: #{tpu_custom_call.1} parent=23 // pred_check_branch
          %443 = sbr.rel target = $region108
        $region107: #{tpu_custom_call.1} parent=23 // pred_region
          %444 = sst [smem:[#allocation12]] [#allocation51]
          %445 = sst [smem:[#allocation13]] [#allocation50]
        $region108: #{tpu_custom_call.1} parent=23 // pred_fallthru
          _
        %447 = shalt.err (0)
        %s449 = sshll.u32 %s440, 4
        %s450 = int_to_ptr.vmem [resolvable:$true] %s449
        %452 = dma.hbm_to_vmem [thread:$0]  %s439, 16, %s450, %s441
        %s453 = sadd.s32 %s115, 20
        %s454 = sld [smem:[#allocation5 + %s453]]
        %s455 = smul.addr %s454, 16
        %s456 = scalar_lea.hbm %s1, %s455
        %s457 = scalar_lea.vmem [#allocation2], 20
        %s458 = scalar_lea.sflag [#allocation3], 20
        // Predicated region
        $region109: #{tpu_custom_call.1} parent=23 // pred_check
          _
        $region110: #{tpu_custom_call.1} parent=23 // pred_check_branch
          %460 = sbr.rel target = $region112
        $region111: #{tpu_custom_call.1} parent=23 // pred_region
          %461 = sst [smem:[#allocation12]] [#allocation53]
          %462 = sst [smem:[#allocation13]] [#allocation52]
        $region112: #{tpu_custom_call.1} parent=23 // pred_fallthru
          _
        %464 = shalt.err (0)
        %s466 = sshll.u32 %s457, 4
        %s467 = int_to_ptr.vmem [resolvable:$true] %s466
        %469 = dma.hbm_to_vmem [thread:$0]  %s456, 16, %s467, %s458
        %s470 = sadd.s32 %s115, 21
        %s471 = sld [smem:[#allocation5 + %s470]]
        %s472 = smul.addr %s471, 16
        %s473 = scalar_lea.hbm %s1, %s472
        %s474 = scalar_lea.vmem [#allocation2], 21
        %s475 = scalar_lea.sflag [#allocation3], 21
        // Predicated region
        $region113: #{tpu_custom_call.1} parent=23 // pred_check
          _
        $region114: #{tpu_custom_call.1} parent=23 // pred_check_branch
          %477 = sbr.rel target = $region116
        $region115: #{tpu_custom_call.1} parent=23 // pred_region
          %478 = sst [smem:[#allocation12]] [#allocation55]
          %479 = sst [smem:[#allocation13]] [#allocation54]
        $region116: #{tpu_custom_call.1} parent=23 // pred_fallthru
          _
        %481 = shalt.err (0)
        %s483 = sshll.u32 %s474, 4
        %s484 = int_to_ptr.vmem [resolvable:$true] %s483
        %486 = dma.hbm_to_vmem [thread:$0]  %s473, 16, %s484, %s475
        %s487 = sadd.s32 %s115, 22
        %s488 = sld [smem:[#allocation5 + %s487]]
        %s489 = smul.addr %s488, 16
        %s490 = scalar_lea.hbm %s1, %s489
        %s491 = scalar_lea.vmem [#allocation2], 22
        %s492 = scalar_lea.sflag [#allocation3], 22
        // Predicated region
        $region117: #{tpu_custom_call.1} parent=23 // pred_check
          _
        $region118: #{tpu_custom_call.1} parent=23 // pred_check_branch
          %494 = sbr.rel target = $region120
        $region119: #{tpu_custom_call.1} parent=23 // pred_region
          %495 = sst [smem:[#allocation12]] [#allocation57]
          %496 = sst [smem:[#allocation13]] [#allocation56]
        $region120: #{tpu_custom_call.1} parent=23 // pred_fallthru
          _
        %498 = shalt.err (0)
        %s500 = sshll.u32 %s491, 4
        %s501 = int_to_ptr.vmem [resolvable:$true] %s500
        %503 = dma.hbm_to_vmem [thread:$0]  %s490, 16, %s501, %s492
        %s504 = sadd.s32 %s115, 23
        %s505 = sld [smem:[#allocation5 + %s504]]
        %s506 = smul.addr %s505, 16
        %s507 = scalar_lea.hbm %s1, %s506
        %s508 = scalar_lea.vmem [#allocation2], 23
        %s509 = scalar_lea.sflag [#allocation3], 23
        // Predicated region
        $region121: #{tpu_custom_call.1} parent=23 // pred_check
          _
        $region122: #{tpu_custom_call.1} parent=23 // pred_check_branch
          %511 = sbr.rel target = $region124
        $region123: #{tpu_custom_call.1} parent=23 // pred_region
          %512 = sst [smem:[#allocation12]] [#allocation59]
          %513 = sst [smem:[#allocation13]] [#allocation58]
        $region124: #{tpu_custom_call.1} parent=23 // pred_fallthru
          _
        %515 = shalt.err (0)
        %s517 = sshll.u32 %s508, 4
        %s518 = int_to_ptr.vmem [resolvable:$true] %s517
        %520 = dma.hbm_to_vmem [thread:$0]  %s507, 16, %s518, %s509
        %s521 = sadd.s32 %s115, 24
        %s522 = sld [smem:[#allocation5 + %s521]]
        %s523 = smul.addr %s522, 16
        %s524 = scalar_lea.hbm %s1, %s523
        %s525 = scalar_lea.vmem [#allocation2], 24
        %s526 = scalar_lea.sflag [#allocation3], 24
        // Predicated region
        $region125: #{tpu_custom_call.1} parent=23 // pred_check
          _
        $region126: #{tpu_custom_call.1} parent=23 // pred_check_branch
          %528 = sbr.rel target = $region128
        $region127: #{tpu_custom_call.1} parent=23 // pred_region
          %529 = sst [smem:[#allocation12]] [#allocation61]
          %530 = sst [smem:[#allocation13]] [#allocation60]
        $region128: #{tpu_custom_call.1} parent=23 // pred_fallthru
          _
        %532 = shalt.err (0)
        %s534 = sshll.u32 %s525, 4
        %s535 = int_to_ptr.vmem [resolvable:$true] %s534
        %537 = dma.hbm_to_vmem [thread:$0]  %s524, 16, %s535, %s526
        %s538 = sadd.s32 %s115, 25
        %s539 = sld [smem:[#allocation5 + %s538]]
        %s540 = smul.addr %s539, 16
        %s541 = scalar_lea.hbm %s1, %s540
        %s542 = scalar_lea.vmem [#allocation2], 25
        %s543 = scalar_lea.sflag [#allocation3], 25
        // Predicated region
        $region129: #{tpu_custom_call.1} parent=23 // pred_check
          _
        $region130: #{tpu_custom_call.1} parent=23 // pred_check_branch
          %545 = sbr.rel target = $region132
        $region131: #{tpu_custom_call.1} parent=23 // pred_region
          %546 = sst [smem:[#allocation12]] [#allocation63]
          %547 = sst [smem:[#allocation13]] [#allocation62]
        $region132: #{tpu_custom_call.1} parent=23 // pred_fallthru
          _
        %549 = shalt.err (0)
        %s551 = sshll.u32 %s542, 4
        %s552 = int_to_ptr.vmem [resolvable:$true] %s551
        %554 = dma.hbm_to_vmem [thread:$0]  %s541, 16, %s552, %s543
        %s555 = sadd.s32 %s115, 26
        %s556 = sld [smem:[#allocation5 + %s555]]
        %s557 = smul.addr %s556, 16
        %s558 = scalar_lea.hbm %s1, %s557
        %s559 = scalar_lea.vmem [#allocation2], 26
        %s560 = scalar_lea.sflag [#allocation3], 26
        // Predicated region
        $region133: #{tpu_custom_call.1} parent=23 // pred_check
          _
        $region134: #{tpu_custom_call.1} parent=23 // pred_check_branch
          %562 = sbr.rel target = $region136
        $region135: #{tpu_custom_call.1} parent=23 // pred_region
          %563 = sst [smem:[#allocation12]] [#allocation65]
          %564 = sst [smem:[#allocation13]] [#allocation64]
        $region136: #{tpu_custom_call.1} parent=23 // pred_fallthru
          _
        %566 = shalt.err (0)
        %s568 = sshll.u32 %s559, 4
        %s569 = int_to_ptr.vmem [resolvable:$true] %s568
        %571 = dma.hbm_to_vmem [thread:$0]  %s558, 16, %s569, %s560
        %s572 = sadd.s32 %s115, 27
        %s573 = sld [smem:[#allocation5 + %s572]]
        %s574 = smul.addr %s573, 16
        %s575 = scalar_lea.hbm %s1, %s574
        %s576 = scalar_lea.vmem [#allocation2], 27
        %s577 = scalar_lea.sflag [#allocation3], 27
        // Predicated region
        $region137: #{tpu_custom_call.1} parent=23 // pred_check
          _
        $region138: #{tpu_custom_call.1} parent=23 // pred_check_branch
          %579 = sbr.rel target = $region140
        $region139: #{tpu_custom_call.1} parent=23 // pred_region
          %580 = sst [smem:[#allocation12]] [#allocation67]
          %581 = sst [smem:[#allocation13]] [#allocation66]
        $region140: #{tpu_custom_call.1} parent=23 // pred_fallthru
          _
        %583 = shalt.err (0)
        %s585 = sshll.u32 %s576, 4
        %s586 = int_to_ptr.vmem [resolvable:$true] %s585
        %588 = dma.hbm_to_vmem [thread:$0]  %s575, 16, %s586, %s577
        %s589 = sadd.s32 %s115, 28
        %s590 = sld [smem:[#allocation5 + %s589]]
        %s591 = smul.addr %s590, 16
        %s592 = scalar_lea.hbm %s1, %s591
        %s593 = scalar_lea.vmem [#allocation2], 28
        %s594 = scalar_lea.sflag [#allocation3], 28
        // Predicated region
        $region141: #{tpu_custom_call.1} parent=23 // pred_check
          _
        $region142: #{tpu_custom_call.1} parent=23 // pred_check_branch
          %596 = sbr.rel target = $region144
        $region143: #{tpu_custom_call.1} parent=23 // pred_region
          %597 = sst [smem:[#allocation12]] [#allocation69]
          %598 = sst [smem:[#allocation13]] [#allocation68]
        $region144: #{tpu_custom_call.1} parent=23 // pred_fallthru
          _
        %600 = shalt.err (0)
        %s602 = sshll.u32 %s593, 4
        %s603 = int_to_ptr.vmem [resolvable:$true] %s602
        %605 = dma.hbm_to_vmem [thread:$0]  %s592, 16, %s603, %s594
        %s606 = sadd.s32 %s115, 29
        %s607 = sld [smem:[#allocation5 + %s606]]
        %s608 = smul.addr %s607, 16
        %s609 = scalar_lea.hbm %s1, %s608
        %s610 = scalar_lea.vmem [#allocation2], 29
        %s611 = scalar_lea.sflag [#allocation3], 29
        // Predicated region
        $region145: #{tpu_custom_call.1} parent=23 // pred_check
          _
        $region146: #{tpu_custom_call.1} parent=23 // pred_check_branch
          %613 = sbr.rel target = $region148
        $region147: #{tpu_custom_call.1} parent=23 // pred_region
          %614 = sst [smem:[#allocation12]] [#allocation71]
          %615 = sst [smem:[#allocation13]] [#allocation70]
        $region148: #{tpu_custom_call.1} parent=23 // pred_fallthru
          _
        %617 = shalt.err (0)
        %s619 = sshll.u32 %s610, 4
        %s620 = int_to_ptr.vmem [resolvable:$true] %s619
        %622 = dma.hbm_to_vmem [thread:$0]  %s609, 16, %s620, %s611
        %s623 = sadd.s32 %s115, 30
        %s624 = sld [smem:[#allocation5 + %s623]]
        %s625 = smul.addr %s624, 16
        %s626 = scalar_lea.hbm %s1, %s625
        %s627 = scalar_lea.vmem [#allocation2], 30
        %s628 = scalar_lea.sflag [#allocation3], 30
        // Predicated region
        $region149: #{tpu_custom_call.1} parent=23 // pred_check
          _
        $region150: #{tpu_custom_call.1} parent=23 // pred_check_branch
          %630 = sbr.rel target = $region152
        $region151: #{tpu_custom_call.1} parent=23 // pred_region
          %631 = sst [smem:[#allocation12]] [#allocation73]
          %632 = sst [smem:[#allocation13]] [#allocation72]
        $region152: #{tpu_custom_call.1} parent=23 // pred_fallthru
          _
        %634 = shalt.err (0)
        %s636 = sshll.u32 %s627, 4
        %s637 = int_to_ptr.vmem [resolvable:$true] %s636
        %639 = dma.hbm_to_vmem [thread:$0]  %s626, 16, %s637, %s628
        %s640 = sadd.s32 %s115, 31
        %s641 = sld [smem:[#allocation5 + %s640]]
        %s642 = smul.addr %s641, 16
        %s643 = scalar_lea.hbm %s1, %s642
        %s644 = scalar_lea.vmem [#allocation2], 31
        %s645 = scalar_lea.sflag [#allocation3], 31
        // Predicated region
        $region153: #{tpu_custom_call.1} parent=23 // pred_check
          _
        $region154: #{tpu_custom_call.1} parent=23 // pred_check_branch
          %647 = sbr.rel target = $region156
        $region155: #{tpu_custom_call.1} parent=23 // pred_region
          %648 = sst [smem:[#allocation12]] [#allocation75]
          %649 = sst [smem:[#allocation13]] [#allocation74]
        $region156: #{tpu_custom_call.1} parent=23 // pred_fallthru
          _
        %651 = shalt.err (0)
        %s653 = sshll.u32 %s644, 4
        %s654 = int_to_ptr.vmem [resolvable:$true] %s653
        %656 = dma.hbm_to_vmem [thread:$0]  %s643, 16, %s654, %s645
        %s657 = smul.u32 1, 1
        %s658 = sshll.u32 %s657, 4
        %659 = dma.done [#allocation3], %s658
        %s660 = sshll.u32 %s657, 4
        %661 = dma.done %s135, %s660
        %s662 = sshll.u32 %s657, 4
        %663 = dma.done %s152, %s662
        %s664 = sshll.u32 %s657, 4
        %665 = dma.done %s169, %s664
        %s666 = sshll.u32 %s657, 4
        %667 = dma.done %s186, %s666
        %s668 = sshll.u32 %s657, 4
        %669 = dma.done %s203, %s668
        %s670 = sshll.u32 %s657, 4
        %671 = dma.done %s220, %s670
        %s672 = sshll.u32 %s657, 4
        %673 = dma.done %s237, %s672
        %s674 = sshll.u32 %s657, 4
        %675 = dma.done %s254, %s674
        %s676 = sshll.u32 %s657, 4
        %677 = dma.done %s271, %s676
        %s678 = sshll.u32 %s657, 4
        %679 = dma.done %s288, %s678
        %s680 = sshll.u32 %s657, 4
        %681 = dma.done %s305, %s680
        %s682 = sshll.u32 %s657, 4
        %683 = dma.done %s322, %s682
        %s684 = sshll.u32 %s657, 4
        %685 = dma.done %s339, %s684
        %s686 = sshll.u32 %s657, 4
        %687 = dma.done %s356, %s686
        %s688 = sshll.u32 %s657, 4
        %689 = dma.done %s373, %s688
        %s690 = sshll.u32 %s657, 4
        %691 = dma.done %s390, %s690
        %s692 = sshll.u32 %s657, 4
        %693 = dma.done %s407, %s692
        %s694 = sshll.u32 %s657, 4
        %695 = dma.done %s424, %s694
        %s696 = sshll.u32 %s657, 4
        %697 = dma.done %s441, %s696
        %s698 = sshll.u32 %s657, 4
        %699 = dma.done %s458, %s698
        %s700 = sshll.u32 %s657, 4
        %701 = dma.done %s475, %s700
        %s702 = sshll.u32 %s657, 4
        %703 = dma.done %s492, %s702
        %s704 = sshll.u32 %s657, 4
        %705 = dma.done %s509, %s704
        %s706 = sshll.u32 %s657, 4
        %707 = dma.done %s526, %s706
        %s708 = sshll.u32 %s657, 4
        %709 = dma.done %s543, %s708
        %s710 = sshll.u32 %s657, 4
        %711 = dma.done %s560, %s710
        %s712 = sshll.u32 %s657, 4
        %713 = dma.done %s577, %s712
        %s714 = sshll.u32 %s657, 4
        %715 = dma.done %s594, %s714
        %s716 = sshll.u32 %s657, 4
        %717 = dma.done %s611, %s716
        %s718 = sshll.u32 %s657, 4
        %719 = dma.done %s628, %s718
        %s720 = sshll.u32 %s657, 4
        %721 = dma.done %s645, %s720
        %v722 = vld [vmem:[#allocation2] sm:$0xff]
        %v723 = vld [vmem:[#allocation2 + $0x8] sm:$0xff]
        %v724 = vld [vmem:[#allocation2 + $0x10] sm:$0xff]
        %v725 = vld [vmem:[#allocation2 + $0x18] sm:$0xff]
        %v726 = vld [vmem:[#allocation6] sm:$0xff]
        %v727 = vadd.f32 %v722, %v726
        %v728 = vadd.f32 %v723, %v726
        %v729 = vadd.f32 %v724, %v726
        %v730 = vadd.f32 %v725, %v726
        %731 = vst [vmem:[%s113] sm:$0xff] %v727
        %732 = vst [vmem:[%s113 + $0x8] sm:$0xff] %v728
        %733 = vst [vmem:[%s113 + $0x10] sm:$0xff] %v729
        %734 = vst [vmem:[%s113 + $0x18] sm:$0xff] %v730
        %s735 = sand.u32 %s51, 1
        %s736 = scalar_lea.sflag [#allocation8], %s735
        %s737 = sand.u32 %s51, 1
        %s738 = smul.addr %s737, 32
        %s739 = scalar_lea.vmem [#allocation9], %s738
        // Predicated region
        $region157: #{tpu_custom_call.1} parent=23 // pred_check
          %p740 = pneg %p61
        $region158: #{tpu_custom_call.1} parent=23 // pred_check_branch
          %742 = sbr.rel (%p740) target = $region160
        $region159: #{tpu_custom_call.1} parent=23 // pred_region
          %s743 = smul.u32 4, %s22
          %s745 = ssub.s32 512, 512
          %746 = vsyncadd %s736, %s745
          %s747 = smul.addr %s743, 128
          %s748 = scalar_lea.hbm %s3, %s747
          %s749 = sshll.u32 %s739, 4
          %s750 = int_to_ptr.vmem [resolvable:$true] %s749
          %755 = dma.vmem_to_hbm [thread:$0]  %s750, 512, %s748, %s736, 128, 128, 8
        $region160: #{tpu_custom_call.1} parent=23 // pred_fallthru
          _
      $region24: #{tpu_custom_call.1} parent=5 // pred_fallthru
        _
      %p756 = scmp.le.s32.totalorder 2, %s17
      // Predicated region
      $region161: #{tpu_custom_call.1} parent=5 // pred_check
        %p757 = pneg %p756
      $region162: #{tpu_custom_call.1} parent=5 // pred_check_branch
        %759 = sbr.rel (%p757) target = $region164
      $region163: #{tpu_custom_call.1} parent=5 // pred_region
        %s760 = ssub.s32 %s17, 2
        // Predicated region
        $region165: #{tpu_custom_call.1} parent=163 // pred_check
          %p761 = pneg %p67
        $region166: #{tpu_custom_call.1} parent=163 // pred_check_branch
          %763 = sbr.rel (%p761) target = $region168
        $region167: #{tpu_custom_call.1} parent=163 // pred_region
          %s764 = sand.u32 %s52, 1
          %s765 = scalar_lea.sflag [#allocation8], %s764
          %s766 = sand.u32 %s52, 1
          %s767 = smul.addr %s766, 32
          %s768 = scalar_lea.vmem [#allocation9], %s767
          %769 = dma.done %s765, 512
        $region168: #{tpu_custom_call.1} parent=163 // pred_fallthru
          _
      $region164: #{tpu_custom_call.1} parent=5 // pred_fallthru
        _
    $region6: #{tpu_custom_call.1} parent=1 // loop_footer
      %s21 = sadd.s32 1, %s17
    $region7: #{tpu_custom_call.1} parent=1 // loop_footer_branch
      %16 = sbr.rel target = $region3
    $region8: #{tpu_custom_call.1} parent=1 // loop_exit
      _
    %770 = vsyncpa [#allocation7], 1
    %s771 = scalar_lea.sflag [#allocation7], 1
    %772 = vsyncpa %s771, 1
    %773 = vsyncpa [#allocation8], 1
    %s774 = scalar_lea.sflag [#allocation8], 1
    %775 = vsyncpa %s774, 1
  %776 = vsyncmov [#allocation3]
  %s777 = vpop.sfrf %776
  %p778 = scmp.eq.s32.totalorder %s777, 0
  %p779 = pneg %p778
  %781 = shalt.err (%p779)
  %s782 = scalar_lea.sflag [#allocation3], 1
  %783 = vsyncmov %s782
  %s784 = vpop.sfrf %783
  %p785 = scmp.eq.s32.totalorder %s784, 0
  %p786 = pneg %p785
  %788 = shalt.err (%p786)
  %s789 = scalar_lea.sflag [#allocation3], 2
  %790 = vsyncmov %s789
  %s791 = vpop.sfrf %790
  %p792 = scmp.eq.s32.totalorder %s791, 0
  %p793 = pneg %p792
  %795 = shalt.err (%p793)
  %s796 = scalar_lea.sflag [#allocation3], 3
  %797 = vsyncmov %s796
  %s798 = vpop.sfrf %797
  %p799 = scmp.eq.s32.totalorder %s798, 0
  %p800 = pneg %p799
  %802 = shalt.err (%p800)
  %s803 = scalar_lea.sflag [#allocation3], 4
  %804 = vsyncmov %s803
  %s805 = vpop.sfrf %804
  %p806 = scmp.eq.s32.totalorder %s805, 0
  %p807 = pneg %p806
  %809 = shalt.err (%p807)
  %s810 = scalar_lea.sflag [#allocation3], 5
  %811 = vsyncmov %s810
  %s812 = vpop.sfrf %811
  %p813 = scmp.eq.s32.totalorder %s812, 0
  %p814 = pneg %p813
  %816 = shalt.err (%p814)
  %s817 = scalar_lea.sflag [#allocation3], 6
  %818 = vsyncmov %s817
  %s819 = vpop.sfrf %818
  %p820 = scmp.eq.s32.totalorder %s819, 0
  %p821 = pneg %p820
  %823 = shalt.err (%p821)
  %s824 = scalar_lea.sflag [#allocation3], 7
  %825 = vsyncmov %s824
  %s826 = vpop.sfrf %825
  %p827 = scmp.eq.s32.totalorder %s826, 0
  %p828 = pneg %p827
  %830 = shalt.err (%p828)
  %s831 = scalar_lea.sflag [#allocation3], 8
  %832 = vsyncmov %s831
  %s833 = vpop.sfrf %832
  %p834 = scmp.eq.s32.totalorder %s833, 0
  %p835 = pneg %p834
  %837 = shalt.err (%p835)
  %s838 = scalar_lea.sflag [#allocation3], 9
  %839 = vsyncmov %s838
  %s840 = vpop.sfrf %839
  %p841 = scmp.eq.s32.totalorder %s840, 0
  %p842 = pneg %p841
  %844 = shalt.err (%p842)
  %s845 = scalar_lea.sflag [#allocation3], 10
  %846 = vsyncmov %s845
  %s847 = vpop.sfrf %846
  %p848 = scmp.eq.s32.totalorder %s847, 0
  %p849 = pneg %p848
  %851 = shalt.err (%p849)
  %s852 = scalar_lea.sflag [#allocation3], 11
  %853 = vsyncmov %s852
  %s854 = vpop.sfrf %853
  %p855 = scmp.eq.s32.totalorder %s854, 0
  %p856 = pneg %p855
  %858 = shalt.err (%p856)
  %s859 = scalar_lea.sflag [#allocation3], 12
  %860 = vsyncmov %s859
  %s861 = vpop.sfrf %860
  %p862 = scmp.eq.s32.totalorder %s861, 0
  %p863 = pneg %p862
  %865 = shalt.err (%p863)
  %s866 = scalar_lea.sflag [#allocation3], 13
  %867 = vsyncmov %s866
  %s868 = vpop.sfrf %867
  %p869 = scmp.eq.s32.totalorder %s868, 0
  %p870 = pneg %p869
  %872 = shalt.err (%p870)
  %s873 = scalar_lea.sflag [#allocation3], 14
  %874 = vsyncmov %s873
  %s875 = vpop.sfrf %874
  %p876 = scmp.eq.s32.totalorder %s875, 0
  %p877 = pneg %p876
  %879 = shalt.err (%p877)
  %s880 = scalar_lea.sflag [#allocation3], 15
  %881 = vsyncmov %s880
  %s882 = vpop.sfrf %881
  %p883 = scmp.eq.s32.totalorder %s882, 0
  %p884 = pneg %p883
  %886 = shalt.err (%p884)
  %s887 = scalar_lea.sflag [#allocation3], 16
  %888 = vsyncmov %s887
  %s889 = vpop.sfrf %888
  %p890 = scmp.eq.s32.totalorder %s889, 0
  %p891 = pneg %p890
  %893 = shalt.err (%p891)
  %s894 = scalar_lea.sflag [#allocation3], 17
  %895 = vsyncmov %s894
  %s896 = vpop.sfrf %895
  %p897 = scmp.eq.s32.totalorder %s896, 0
  %p898 = pneg %p897
  %900 = shalt.err (%p898)
  %s901 = scalar_lea.sflag [#allocation3], 18
  %902 = vsyncmov %s901
  %s903 = vpop.sfrf %902
  %p904 = scmp.eq.s32.totalorder %s903, 0
  %p905 = pneg %p904
  %907 = shalt.err (%p905)
  %s908 = scalar_lea.sflag [#allocation3], 19
  %909 = vsyncmov %s908
  %s910 = vpop.sfrf %909
  %p911 = scmp.eq.s32.totalorder %s910, 0
  %p912 = pneg %p911
  %914 = shalt.err (%p912)
  %s915 = scalar_lea.sflag [#allocation3], 20
  %916 = vsyncmov %s915
  %s917 = vpop.sfrf %916
  %p918 = scmp.eq.s32.totalorder %s917, 0
  %p919 = pneg %p918
  %921 = shalt.err (%p919)
  %s922 = scalar_lea.sflag [#allocation3], 21
  %923 = vsyncmov %s922
  %s924 = vpop.sfrf %923
  %p925 = scmp.eq.s32.totalorder %s924, 0
  %p926 = pneg %p925
  %928 = shalt.err (%p926)
  %s929 = scalar_lea.sflag [#allocation3], 22
  %930 = vsyncmov %s929
  %s931 = vpop.sfrf %930
  %p932 = scmp.eq.s32.totalorder %s931, 0
  %p933 = pneg %p932
  %935 = shalt.err (%p933)
  %s936 = scalar_lea.sflag [#allocation3], 23
  %937 = vsyncmov %s936
  %s938 = vpop.sfrf %937
  %p939 = scmp.eq.s32.totalorder %s938, 0
  %p940 = pneg %p939
  %942 = shalt.err (%p940)
  %s943 = scalar_lea.sflag [#allocation3], 24
  %944 = vsyncmov %s943
  %s945 = vpop.sfrf %944
  %p946 = scmp.eq.s32.totalorder %s945, 0
  %p947 = pneg %p946
  %949 = shalt.err (%p947)
  %s950 = scalar_lea.sflag [#allocation3], 25
  %951 = vsyncmov %s950
  %s952 = vpop.sfrf %951
  %p953 = scmp.eq.s32.totalorder %s952, 0
  %p954 = pneg %p953
  %956 = shalt.err (%p954)
  %s957 = scalar_lea.sflag [#allocation3], 26
  %958 = vsyncmov %s957
  %s959 = vpop.sfrf %958
  %p960 = scmp.eq.s32.totalorder %s959, 0
  %p961 = pneg %p960
  %963 = shalt.err (%p961)
  %s964 = scalar_lea.sflag [#allocation3], 27
  %965 = vsyncmov %s964
  %s966 = vpop.sfrf %965
  %p967 = scmp.eq.s32.totalorder %s966, 0
  %p968 = pneg %p967
  %970 = shalt.err (%p968)
  %s971 = scalar_lea.sflag [#allocation3], 28
  %972 = vsyncmov %s971
  %s973 = vpop.sfrf %972
  %p974 = scmp.eq.s32.totalorder %s973, 0
  %p975 = pneg %p974
  %977 = shalt.err (%p975)
  %s978 = scalar_lea.sflag [#allocation3], 29
  %979 = vsyncmov %s978
  %s980 = vpop.sfrf %979
  %p981 = scmp.eq.s32.totalorder %s980, 0
  %p982 = pneg %p981
  %984 = shalt.err (%p982)
  %s985 = scalar_lea.sflag [#allocation3], 30
  %986 = vsyncmov %s985
  %s987 = vpop.sfrf %986
  %p988 = scmp.eq.s32.totalorder %s987, 0
  %p989 = pneg %p988
  %991 = shalt.err (%p989)
  %s992 = scalar_lea.sflag [#allocation3], 31
  %993 = vsyncmov %s992
  %s994 = vpop.sfrf %993
  %p995 = scmp.eq.s32.totalorder %s994, 0
  %p996 = pneg %p995
  %998 = shalt.err (%p996)

</llo_original>
